<compile_context>
chip_gen: v7x
topology: tpu7x:2x2x1
jax: 0.10.0
libtpu: 0.0.40
codegen_flags: <defaults>
</compile_context>

<pallas_src>
import functools

import jax
import jax.numpy as jnp
from jax.experimental import pallas as pl
from jax.experimental.pallas import tpu as pltpu


def _round_up(a, b):
    return ((a + b - 1) // b) * b


def _dropout_kernel(seed_ref, x_ref, o_ref, *, keep_threshold, scale):
    tm, lanes = x_ref.shape
    i = pl.program_id(0)

    # Global element index (unique per element across the whole array).
    row = jax.lax.broadcasted_iota(jnp.int32, (tm, lanes), 0).astype(jnp.uint32)
    col = jax.lax.broadcasted_iota(jnp.int32, (tm, lanes), 1).astype(jnp.uint32)
    gidx = ((i * tm).astype(jnp.uint32) + row) * jnp.uint32(lanes) + col

    # Counter-based hash (lowbias32 variant), seeded from SMEM scalar.
    s = seed_ref[0].astype(jnp.uint32)
    z = gidx + s * jnp.uint32(0x9E3779B9)
    z = z ^ (z >> 16)
    z = z * jnp.uint32(0x7FEB352D)
    z = z ^ (z >> 15)
    z = z * jnp.uint32(0x846CA68B)
    z = z ^ (z >> 16)

    # Keep mask: direct uint32 threshold compare (1 cmp, no float convert).
    keep = z < jnp.uint32(keep_threshold)

    x = x_ref[...]
    scaled = x * jnp.asarray(scale, dtype=x.dtype)
    o_ref[...] = jnp.where(keep, scaled, jnp.zeros_like(scaled))


def pallas_dropout(x, seed, p=0.5, training=True, *, lane_width=512, block_rows=512):
    """Dropout matching torch.nn.Dropout(p) forward semantics."""
    if (not training) or p == 0.0:
        return x
    if p >= 1.0:
        return jnp.zeros_like(x)

    keep_prob = 1.0 - p
    keep_threshold = min(int(round(keep_prob * (2 ** 32))), 2 ** 32 - 1)
    scale = 1.0 / keep_prob

    orig_shape = x.shape
    total = x.size

    # Lane-dense 2-D streaming layout: (rows, lane_width), lane_width % 128 == 0.
    L = lane_width
    rows = _round_up((total + L - 1) // L, 8)        # sublane-aligned row count
    tm = min(block_rows, rows)                       # rows per block (mult. of 8)
    rows_pad = _round_up(rows, tm)

    flat = x.reshape(-1)
    pad = rows_pad * L - total
    if pad:
        flat = jnp.pad(flat, (0, pad))
    x2d = flat.reshape(rows_pad, L)

    kernel = functools.partial(
        _dropout_kernel, keep_threshold=keep_threshold, scale=scale
    )
    seed_arr = jnp.asarray([seed], dtype=jnp.int32)

    out2d = pl.pallas_call(
        kernel,
        out_shape=jax.ShapeDtypeStruct((rows_pad, L), x.dtype),
        grid_spec=pltpu.PrefetchScalarGridSpec(
            num_scalar_prefetch=1,                   # seed lands in SMEM
            grid=(rows_pad // tm,),
            in_specs=[pl.BlockSpec((tm, L), lambda i, seed_ref: (i, 0))],
            out_specs=pl.BlockSpec((tm, L), lambda i, seed_ref: (i, 0)),
        ),
        compiler_params=pltpu.CompilerParams(
            # Tiles are independent (hash keyed on global index) -> parallel,
            # so v7x can shard the grid across both TensorCores.
            dimension_semantics=("parallel",),
        ),
    )(seed_arr, x2d)

    out_flat = out2d.reshape(-1)
    if pad:
        out_flat = out_flat[:total]
    return out_flat.reshape(orig_shape)


if __name__ == "__main__":
    # Small deterministic input (the PyTorch example uses a 2-D randn tensor).
    key = jax.random.PRNGKey(0)
    x = jax.random.normal(key, (256, 512), dtype=jnp.float32)

    p = 0.5
    out = pallas_dropout(x, seed=1234, p=p, training=True)
    out = jax.block_until_ready(out)

    # Sanity checks on dropout semantics.
    assert out.shape == x.shape and out.dtype == x.dtype
    zero_mask = (out == 0.0)
    kept = ~zero_mask
    # Kept elements must equal x / (1 - p).
    assert jnp.allclose(out[kept], x[kept] / (1.0 - p), rtol=1e-6, atol=1e-6)
    # Drop fraction should be near p.
    drop_frac = float(zero_mask.mean())
    assert abs(drop_frac - p) < 0.03, f"drop fraction {drop_frac} far from p={p}"

    # Eval mode is the identity.
    assert jnp.array_equal(pallas_dropout(x, seed=1234, p=p, training=False), x)

    print("KERNEL_OK")
</pallas_src>

<mosaic_0001>
module attributes {stable_mosaic.version = 11 : i64} {
  func.func @_dropout_kernel(%arg0: i32, %arg1: memref<1xi32, #tpu.memory_space<smem>>, %arg2: memref<256x512xf32, #tpu.memory_space<vmem>>, %arg3: memref<256x512xf32, #tpu.memory_space<vmem>>) attributes {dimension_semantics = [#tpu.dimension_semantics<parallel>], iteration_bounds = array<i64: 1>, scalar_prefetch = 1 : i64, scratch_operands = 0 : i64, tpu.core_type = #tpu.core_type<tc>, window_params = [{transform_indices = @transform_0, window_bounds = array<i64: 256, 512>}, {transform_indices = @transform_1, window_bounds = array<i64: 256, 512>}]} {
    %0 = tpu.iota {dimensions = array<i32: 0>} : vector<256x512xi32>
    %1 = tpu.iota {dimensions = array<i32: 1>} : vector<256x512xi32>
    %c256_i32 = arith.constant 256 : i32
    %2 = arith.muli %arg0, %c256_i32 : i32
    %3 = vector.broadcast %2 : i32 to vector<256x512xi32>
    %4 = arith.addi %3, %0 : vector<256x512xi32>
    %c512_i32 = arith.constant 512 : i32
    %5 = vector.broadcast %c512_i32 : i32 to vector<256x512xi32>
    %6 = arith.muli %4, %5 : vector<256x512xi32>
    %7 = arith.addi %6, %1 : vector<256x512xi32>
    %c0 = arith.constant 0 : index
    %8 = memref.load %arg1[%c0] : memref<1xi32, #tpu.memory_space<smem>>
    %c-1640531527_i32 = arith.constant -1640531527 : i32
    %9 = arith.muli %8, %c-1640531527_i32 : i32
    %10 = vector.broadcast %9 : i32 to vector<256x512xi32>
    %11 = arith.addi %7, %10 : vector<256x512xi32>
    %c16_i32 = arith.constant 16 : i32
    %12 = vector.broadcast %c16_i32 : i32 to vector<256x512xi32>
    %13 = arith.shrui %11, %12 : vector<256x512xi32>
    %14 = arith.xori %11, %13 : vector<256x512xi32>
    %c2146121005_i32 = arith.constant 2146121005 : i32
    %15 = vector.broadcast %c2146121005_i32 : i32 to vector<256x512xi32>
    %16 = arith.muli %14, %15 : vector<256x512xi32>
    %c15_i32 = arith.constant 15 : i32
    %17 = vector.broadcast %c15_i32 : i32 to vector<256x512xi32>
    %18 = arith.shrui %16, %17 : vector<256x512xi32>
    %19 = arith.xori %16, %18 : vector<256x512xi32>
    %c-2073254261_i32 = arith.constant -2073254261 : i32
    %20 = vector.broadcast %c-2073254261_i32 : i32 to vector<256x512xi32>
    %21 = arith.muli %19, %20 : vector<256x512xi32>
    %c16_i32_0 = arith.constant 16 : i32
    %22 = vector.broadcast %c16_i32_0 : i32 to vector<256x512xi32>
    %23 = arith.shrui %21, %22 : vector<256x512xi32>
    %24 = arith.xori %21, %23 : vector<256x512xi32>
    %c-2147483648_i32 = arith.constant -2147483648 : i32
    %25 = vector.broadcast %c-2147483648_i32 : i32 to vector<256x512xi32>
    %26 = arith.cmpi ult, %24, %25 : vector<256x512xi32>
    %c0_1 = arith.constant 0 : index
    %c0_2 = arith.constant 0 : index
    %27 = vector.load %arg2[%c0_1, %c0_2] : memref<256x512xf32, #tpu.memory_space<vmem>>, vector<256x512xf32>
    %cst = arith.constant 2.000000e+00 : f32
    %28 = vector.broadcast %cst : f32 to vector<256x512xf32>
    %29 = arith.mulf %27, %28 : vector<256x512xf32>
    %cst_3 = arith.constant 0.000000e+00 : f32
    %30 = vector.broadcast %cst_3 : f32 to vector<256x512xf32>
    %31 = arith.select %26, %29, %30 : vector<256x512xi1>, vector<256x512xf32>
    %c0_4 = arith.constant 0 : index
    %c0_5 = arith.constant 0 : index
    %32 = vector.load %arg3[%c0_4, %c0_5] : memref<256x512xf32, #tpu.memory_space<vmem>>, vector<256x512xf32>
    tpu.vector_store %arg3[%c0_4, %c0_5], %31 {strides = array<i32>} : memref<256x512xf32, #tpu.memory_space<vmem>>, vector<256x512xf32>,
    return
  }
  func.func @transform_0(%arg0: i32, %arg1: memref<1xi32, #tpu.memory_space<smem>>) -> (i32, i32) {
    %c0_i32 = arith.constant 0 : i32
    %c0_i32_0 = arith.constant 0 : i32
    return %arg0, %c0_i32 : i32, i32
  }
  func.func @transform_1(%arg0: i32, %arg1: memref<1xi32, #tpu.memory_space<smem>>) -> (i32, i32) {
    %c0_i32 = arith.constant 0 : i32
    %c0_i32_0 = arith.constant 0 : i32
    return %arg0, %c0_i32 : i32, i32
  }
}

</mosaic_0001>

<llo_original>
// kernel: tpu_custom_call.1
$region0: #{tpu_custom_call.1}
  #allocation0 [shape = 'u32[]', space=smem, size = 0x4, offset = 0x4, fixed_abs, tag = 'smem constant byte address 0x4 - core index']
  #allocation1 [shape = 'u32[144,128]{1,0:T(1,128)}', space=vmem, size = 0x12000, scoped, tag = 'internal scratch']
  #allocation2 [shape = 's32[1]{0}', space=sflag, size = 0x4, scoped, tag = 'scoped memory for tpu_custom_call.1']
  #allocation3 [shape = 's32[1]{0:T(128)S(6)}', space=smem, size = 0x200, scoped, tag = 'prefetched SMEM operand 0']
  %s0 = inlined_call_operand.<no memory space> [shape: s32[1], index: 0, kind: input, shape index: {}]
  %s1 = inlined_call_operand.hbm [shape: f32[256,512], index: 1, kind: input, shape index: {}]
  %s2 = inlined_call_operand.hbm [shape: f32[256,512], index: 2, kind: output, shape index: {}]
  %s3 = sld [smem:[#allocation0]]
  $region18: #{tpu_custom_call.1} parent=0
    _
  %s5 = ssub.s32 1, %s3
  %s6 = scalar_select 0, %s5, %s3
  %7 = sst [smem:[#allocation3]] %s0
  $region1: #{tpu_custom_call.1} parent=0
    #allocation4 [shape = 'u8[524288]{0}', space=vmem, size = 0x80000, scoped, tag = 'input window, operand 1, single buffered']
    #allocation5 [shape = 's32[1]{0}', space=sflag, size = 0x4, scoped, tag = 'scoped memory for tpu_custom_call.1']
    #allocation6 [shape = 's32[1]{0}', space=sflag, size = 0x4, scoped, tag = 'scoped memory for tpu_custom_call.1']
    #allocation7 [shape = 'u8[524288]{0}', space=vmem, size = 0x80000, scoped, tag = 'output window, operand 0, single buffered']
    %8 = vsyncpa [#allocation5], 0
    %9 = vsyncpa [#allocation6], 0
    // Predicated region
    $region2: #{tpu_custom_call.1} parent=1 // pred_check
      _
    $region3: #{tpu_custom_call.1} parent=1 // pred_check_branch
      %11 = sbr.rel (0) target = $region5
    $region4: #{tpu_custom_call.1} parent=1 // pred_region
      %s13 = ssub.s32 16384, 16384
      %14 = vsyncadd [#allocation5], %s13
      %s15 = sshll.u32 [#allocation4], 4
      %s16 = int_to_ptr.vmem [resolvable:$true] %s15
      %21 = dma.hbm_to_vmem [thread:$0]  %s1, 16384, %s16, [#allocation5], 512, 512, 32
    $region5: #{tpu_custom_call.1} parent=1 // pred_fallthru
      _
    // Predicated region
    $region6: #{tpu_custom_call.1} parent=1 // pred_check
      _
    $region7: #{tpu_custom_call.1} parent=1 // pred_check_branch
      %23 = sbr.rel (0) target = $region9
    $region8: #{tpu_custom_call.1} parent=1 // pred_region
      %24 = dma.done [#allocation5], 16384
    $region9: #{tpu_custom_call.1} parent=1 // pred_fallthru
      _
    %v25 = vlaneseq
    %v26 = vshrl.u32 %v25, 7
    %v27 = vadd.s32 %v26, 8
    %v28 = vadd.s32 %v26, 16
    %v29 = vadd.s32 %v26, 24
    %v30 = vadd.s32 %v26, 32
    %v31 = vadd.s32 %v26, 40
    %v32 = vadd.s32 %v26, 48
    %v33 = vadd.s32 %v26, 56
    %v34 = vadd.s32 %v26, 64
    %v35 = vadd.s32 %v26, 72
    %v36 = vadd.s32 %v26, 80
    %v37 = vadd.s32 %v26, 88
    %v38 = vadd.s32 %v26, 96
    %v39 = vadd.s32 %v26, 104
    %v40 = vadd.s32 %v26, 112
    %v41 = vadd.s32 %v26, 120
    %v42 = vadd.s32 %v26, 128
    %v43 = vadd.s32 %v26, 136
    %v44 = vadd.s32 %v26, 144
    %v45 = vadd.s32 %v26, 152
    %v46 = vadd.s32 %v26, 160
    %v47 = vadd.s32 %v26, 168
    %v48 = vadd.s32 %v26, 176
    %v49 = vadd.s32 %v26, 184
    %v50 = vadd.s32 %v26, 192
    %v51 = vadd.s32 %v26, 200
    %v52 = vadd.s32 %v26, 208
    %v53 = vadd.s32 %v26, 216
    %v54 = vadd.s32 %v26, 224
    %v55 = vadd.s32 %v26, 232
    %v56 = vadd.s32 %v26, 240
    %v57 = vadd.s32 %v26, 248
    %v58 = vlaneseq
    %v59 = vand.u32 %v58, 127
    %v60 = vadd.s32 %v59, 128
    %v61 = vadd.s32 %v59, 256
    %v62 = vadd.s32 %v59, 384
    %s63 = smul.u32 0, 256
    %v64 = vstv %s63
    %v65 = vadd.s32 %v64, %v26
    %v66 = vadd.s32 %v64, %v27
    %v67 = vadd.s32 %v64, %v28
    %v68 = vadd.s32 %v64, %v29
    %v69 = vadd.s32 %v64, %v30
    %v70 = vadd.s32 %v64, %v31
    %v71 = vadd.s32 %v64, %v32
    %v72 = vadd.s32 %v64, %v33
    %v73 = vadd.s32 %v64, %v34
    %v74 = vadd.s32 %v64, %v35
    %v75 = vadd.s32 %v64, %v36
    %v76 = vadd.s32 %v64, %v37
    %v77 = vadd.s32 %v64, %v38
    %v78 = vadd.s32 %v64, %v39
    %v79 = vadd.s32 %v64, %v40
    %v80 = vadd.s32 %v64, %v41
    %v81 = vadd.s32 %v64, %v42
    %v82 = vadd.s32 %v64, %v43
    %v83 = vadd.s32 %v64, %v44
    %v84 = vadd.s32 %v64, %v45
    %v85 = vadd.s32 %v64, %v46
    %v86 = vadd.s32 %v64, %v47
    %v87 = vadd.s32 %v64, %v48
    %v88 = vadd.s32 %v64, %v49
    %v89 = vadd.s32 %v64, %v50
    %v90 = vadd.s32 %v64, %v51
    %v91 = vadd.s32 %v64, %v52
    %v92 = vadd.s32 %v64, %v53
    %v93 = vadd.s32 %v64, %v54
    %v94 = vadd.s32 %v64, %v55
    %v95 = vadd.s32 %v64, %v56
    %v96 = vadd.s32 %v64, %v57
    %v97 = vmul.u32 %v65, 512
    %v98 = vmul.u32 %v66, 512
    %v99 = vmul.u32 %v67, 512
    %v100 = vmul.u32 %v68, 512
    %v101 = vmul.u32 %v69, 512
    %v102 = vmul.u32 %v70, 512
    %v103 = vmul.u32 %v71, 512
    %v104 = vmul.u32 %v72, 512
    %v105 = vmul.u32 %v73, 512
    %v106 = vmul.u32 %v74, 512
    %v107 = vmul.u32 %v75, 512
    %v108 = vmul.u32 %v76, 512
    %v109 = vmul.u32 %v77, 512
    %v110 = vmul.u32 %v78, 512
    %v111 = vmul.u32 %v79, 512
    %v112 = vmul.u32 %v80, 512
    %v113 = vmul.u32 %v81, 512
    %v114 = vmul.u32 %v82, 512
    %v115 = vmul.u32 %v83, 512
    %v116 = vmul.u32 %v84, 512
    %v117 = vmul.u32 %v85, 512
    %v118 = vmul.u32 %v86, 512
    %v119 = vmul.u32 %v87, 512
    %v120 = vmul.u32 %v88, 512
    %v121 = vmul.u32 %v89, 512
    %v122 = vmul.u32 %v90, 512
    %v123 = vmul.u32 %v91, 512
    %v124 = vmul.u32 %v92, 512
    %v125 = vmul.u32 %v93, 512
    %v126 = vmul.u32 %v94, 512
    %v127 = vmul.u32 %v95, 512
    %v128 = vmul.u32 %v96, 512
    %v129 = vadd.s32 %v97, %v59
    %v130 = vadd.s32 %v97, %v60
    %v131 = vadd.s32 %v97, %v61
    %v132 = vadd.s32 %v97, %v62
    %v133 = vadd.s32 %v98, %v59
    %v134 = vadd.s32 %v98, %v60
    %v135 = vadd.s32 %v98, %v61
    %v136 = vadd.s32 %v98, %v62
    %v137 = vadd.s32 %v99, %v59
    %v138 = vadd.s32 %v99, %v60
    %v139 = vadd.s32 %v99, %v61
    %v140 = vadd.s32 %v99, %v62
    %v141 = vadd.s32 %v100, %v59
    %v142 = vadd.s32 %v100, %v60
    %v143 = vadd.s32 %v100, %v61
    %v144 = vadd.s32 %v100, %v62
    %v145 = vadd.s32 %v101, %v59
    %v146 = vadd.s32 %v101, %v60
    %v147 = vadd.s32 %v101, %v61
    %v148 = vadd.s32 %v101, %v62
    %v149 = vadd.s32 %v102, %v59
    %v150 = vadd.s32 %v102, %v60
    %v151 = vadd.s32 %v102, %v61
    %v152 = vadd.s32 %v102, %v62
    %v153 = vadd.s32 %v103, %v59
    %v154 = vadd.s32 %v103, %v60
    %v155 = vadd.s32 %v103, %v61
    %v156 = vadd.s32 %v103, %v62
    %v157 = vadd.s32 %v104, %v59
    %v158 = vadd.s32 %v104, %v60
    %v159 = vadd.s32 %v104, %v61
    %v160 = vadd.s32 %v104, %v62
    %v161 = vadd.s32 %v105, %v59
    %v162 = vadd.s32 %v105, %v60
    %v163 = vadd.s32 %v105, %v61
    %v164 = vadd.s32 %v105, %v62
    %v165 = vadd.s32 %v106, %v59
    %v166 = vadd.s32 %v106, %v60
    %v167 = vadd.s32 %v106, %v61
    %v168 = vadd.s32 %v106, %v62
    %v169 = vadd.s32 %v107, %v59
    %v170 = vadd.s32 %v107, %v60
    %v171 = vadd.s32 %v107, %v61
    %v172 = vadd.s32 %v107, %v62
    %v173 = vadd.s32 %v108, %v59
    %v174 = vadd.s32 %v108, %v60
    %v175 = vadd.s32 %v108, %v61
    %v176 = vadd.s32 %v108, %v62
    %v177 = vadd.s32 %v109, %v59
    %v178 = vadd.s32 %v109, %v60
    %v179 = vadd.s32 %v109, %v61
    %v180 = vadd.s32 %v109, %v62
    %v181 = vadd.s32 %v110, %v59
    %v182 = vadd.s32 %v110, %v60
    %v183 = vadd.s32 %v110, %v61
    %v184 = vadd.s32 %v110, %v62
    %v185 = vadd.s32 %v111, %v59
    %v186 = vadd.s32 %v111, %v60
    %v187 = vadd.s32 %v111, %v61
    %v188 = vadd.s32 %v111, %v62
    %v189 = vadd.s32 %v112, %v59
    %v190 = vadd.s32 %v112, %v60
    %v191 = vadd.s32 %v112, %v61
    %v192 = vadd.s32 %v112, %v62
    %v193 = vadd.s32 %v113, %v59
    %v194 = vadd.s32 %v113, %v60
    %v195 = vadd.s32 %v113, %v61
    %v196 = vadd.s32 %v113, %v62
    %v197 = vadd.s32 %v114, %v59
    %v198 = vadd.s32 %v114, %v60
    %v199 = vadd.s32 %v114, %v61
    %v200 = vadd.s32 %v114, %v62
    %v201 = vadd.s32 %v115, %v59
    %v202 = vadd.s32 %v115, %v60
    %v203 = vadd.s32 %v115, %v61
    %v204 = vadd.s32 %v115, %v62
    %v205 = vadd.s32 %v116, %v59
    %v206 = vadd.s32 %v116, %v60
    %v207 = vadd.s32 %v116, %v61
    %v208 = vadd.s32 %v116, %v62
    %v209 = vadd.s32 %v117, %v59
    %v210 = vadd.s32 %v117, %v60
    %v211 = vadd.s32 %v117, %v61
    %v212 = vadd.s32 %v117, %v62
    %v213 = vadd.s32 %v118, %v59
    %v214 = vadd.s32 %v118, %v60
    %v215 = vadd.s32 %v118, %v61
    %v216 = vadd.s32 %v118, %v62
    %v217 = vadd.s32 %v119, %v59
    %v218 = vadd.s32 %v119, %v60
    %v219 = vadd.s32 %v119, %v61
    %v220 = vadd.s32 %v119, %v62
    %v221 = vadd.s32 %v120, %v59
    %v222 = vadd.s32 %v120, %v60
    %v223 = vadd.s32 %v120, %v61
    %v224 = vadd.s32 %v120, %v62
    %v225 = vadd.s32 %v121, %v59
    %v226 = vadd.s32 %v121, %v60
    %v227 = vadd.s32 %v121, %v61
    %v228 = vadd.s32 %v121, %v62
    %v229 = vadd.s32 %v122, %v59
    %v230 = vadd.s32 %v122, %v60
    %v231 = vadd.s32 %v122, %v61
    %v232 = vadd.s32 %v122, %v62
    %v233 = vadd.s32 %v123, %v59
    %v234 = vadd.s32 %v123, %v60
    %v235 = vadd.s32 %v123, %v61
    %v236 = vadd.s32 %v123, %v62
    %v237 = vadd.s32 %v124, %v59
    %v238 = vadd.s32 %v124, %v60
    %v239 = vadd.s32 %v124, %v61
    %v240 = vadd.s32 %v124, %v62
    %v241 = vadd.s32 %v125, %v59
    %v242 = vadd.s32 %v125, %v60
    %v243 = vadd.s32 %v125, %v61
    %v244 = vadd.s32 %v125, %v62
    %v245 = vadd.s32 %v126, %v59
    %v246 = vadd.s32 %v126, %v60
    %v247 = vadd.s32 %v126, %v61
    %v248 = vadd.s32 %v126, %v62
    %v249 = vadd.s32 %v127, %v59
    %v250 = vadd.s32 %v127, %v60
    %v251 = vadd.s32 %v127, %v61
    %v252 = vadd.s32 %v127, %v62
    %v253 = vadd.s32 %v128, %v59
    %v254 = vadd.s32 %v128, %v60
    %v255 = vadd.s32 %v128, %v61
    %v256 = vadd.s32 %v128, %v62
    %s257 = sld [smem:[#allocation3]]
    %s258 = smul.u32 %s257, 2654435769
    %v259 = vstv %s258
    %v260 = vadd.s32 %v129, %v259
    %v261 = vadd.s32 %v130, %v259
    %v262 = vadd.s32 %v131, %v259
    %v263 = vadd.s32 %v132, %v259
    %v264 = vadd.s32 %v133, %v259
    %v265 = vadd.s32 %v134, %v259
    %v266 = vadd.s32 %v135, %v259
    %v267 = vadd.s32 %v136, %v259
    %v268 = vadd.s32 %v137, %v259
    %v269 = vadd.s32 %v138, %v259
    %v270 = vadd.s32 %v139, %v259
    %v271 = vadd.s32 %v140, %v259
    %v272 = vadd.s32 %v141, %v259
    %v273 = vadd.s32 %v142, %v259
    %v274 = vadd.s32 %v143, %v259
    %v275 = vadd.s32 %v144, %v259
    %v276 = vadd.s32 %v145, %v259
    %v277 = vadd.s32 %v146, %v259
    %v278 = vadd.s32 %v147, %v259
    %v279 = vadd.s32 %v148, %v259
    %v280 = vadd.s32 %v149, %v259
    %v281 = vadd.s32 %v150, %v259
    %v282 = vadd.s32 %v151, %v259
    %v283 = vadd.s32 %v152, %v259
    %v284 = vadd.s32 %v153, %v259
    %v285 = vadd.s32 %v154, %v259
    %v286 = vadd.s32 %v155, %v259
    %v287 = vadd.s32 %v156, %v259
    %v288 = vadd.s32 %v157, %v259
    %v289 = vadd.s32 %v158, %v259
    %v290 = vadd.s32 %v159, %v259
    %v291 = vadd.s32 %v160, %v259
    %v292 = vadd.s32 %v161, %v259
    %v293 = vadd.s32 %v162, %v259
    %v294 = vadd.s32 %v163, %v259
    %v295 = vadd.s32 %v164, %v259
    %v296 = vadd.s32 %v165, %v259
    %v297 = vadd.s32 %v166, %v259
    %v298 = vadd.s32 %v167, %v259
    %v299 = vadd.s32 %v168, %v259
    %v300 = vadd.s32 %v169, %v259
    %v301 = vadd.s32 %v170, %v259
    %v302 = vadd.s32 %v171, %v259
    %v303 = vadd.s32 %v172, %v259
    %v304 = vadd.s32 %v173, %v259
    %v305 = vadd.s32 %v174, %v259
    %v306 = vadd.s32 %v175, %v259
    %v307 = vadd.s32 %v176, %v259
    %v308 = vadd.s32 %v177, %v259
    %v309 = vadd.s32 %v178, %v259
    %v310 = vadd.s32 %v179, %v259
    %v311 = vadd.s32 %v180, %v259
    %v312 = vadd.s32 %v181, %v259
    %v313 = vadd.s32 %v182, %v259
    %v314 = vadd.s32 %v183, %v259
    %v315 = vadd.s32 %v184, %v259
    %v316 = vadd.s32 %v185, %v259
    %v317 = vadd.s32 %v186, %v259
    %v318 = vadd.s32 %v187, %v259
    %v319 = vadd.s32 %v188, %v259
    %v320 = vadd.s32 %v189, %v259
    %v321 = vadd.s32 %v190, %v259
    %v322 = vadd.s32 %v191, %v259
    %v323 = vadd.s32 %v192, %v259
    %v324 = vadd.s32 %v193, %v259
    %v325 = vadd.s32 %v194, %v259
    %v326 = vadd.s32 %v195, %v259
    %v327 = vadd.s32 %v196, %v259
    %v328 = vadd.s32 %v197, %v259
    %v329 = vadd.s32 %v198, %v259
    %v330 = vadd.s32 %v199, %v259
    %v331 = vadd.s32 %v200, %v259
    %v332 = vadd.s32 %v201, %v259
    %v333 = vadd.s32 %v202, %v259
    %v334 = vadd.s32 %v203, %v259
    %v335 = vadd.s32 %v204, %v259
    %v336 = vadd.s32 %v205, %v259
    %v337 = vadd.s32 %v206, %v259
    %v338 = vadd.s32 %v207, %v259
    %v339 = vadd.s32 %v208, %v259
    %v340 = vadd.s32 %v209, %v259
    %v341 = vadd.s32 %v210, %v259
    %v342 = vadd.s32 %v211, %v259
    %v343 = vadd.s32 %v212, %v259
    %v344 = vadd.s32 %v213, %v259
    %v345 = vadd.s32 %v214, %v259
    %v346 = vadd.s32 %v215, %v259
    %v347 = vadd.s32 %v216, %v259
    %v348 = vadd.s32 %v217, %v259
    %v349 = vadd.s32 %v218, %v259
    %v350 = vadd.s32 %v219, %v259
    %v351 = vadd.s32 %v220, %v259
    %v352 = vadd.s32 %v221, %v259
    %v353 = vadd.s32 %v222, %v259
    %v354 = vadd.s32 %v223, %v259
    %v355 = vadd.s32 %v224, %v259
    %v356 = vadd.s32 %v225, %v259
    %v357 = vadd.s32 %v226, %v259
    %v358 = vadd.s32 %v227, %v259
    %v359 = vadd.s32 %v228, %v259
    %v360 = vadd.s32 %v229, %v259
    %v361 = vadd.s32 %v230, %v259
    %v362 = vadd.s32 %v231, %v259
    %v363 = vadd.s32 %v232, %v259
    %v364 = vadd.s32 %v233, %v259
    %v365 = vadd.s32 %v234, %v259
    %v366 = vadd.s32 %v235, %v259
    %v367 = vadd.s32 %v236, %v259
    %v368 = vadd.s32 %v237, %v259
    %v369 = vadd.s32 %v238, %v259
    %v370 = vadd.s32 %v239, %v259
    %v371 = vadd.s32 %v240, %v259
    %v372 = vadd.s32 %v241, %v259
    %v373 = vadd.s32 %v242, %v259
    %v374 = vadd.s32 %v243, %v259
    %v375 = vadd.s32 %v244, %v259
    %v376 = vadd.s32 %v245, %v259
    %v377 = vadd.s32 %v246, %v259
    %v378 = vadd.s32 %v247, %v259
    %v379 = vadd.s32 %v248, %v259
    %v380 = vadd.s32 %v249, %v259
    %v381 = vadd.s32 %v250, %v259
    %v382 = vadd.s32 %v251, %v259
    %v383 = vadd.s32 %v252, %v259
    %v384 = vadd.s32 %v253, %v259
    %v385 = vadd.s32 %v254, %v259
    %v386 = vadd.s32 %v255, %v259
    %v387 = vadd.s32 %v256, %v259
    %v388 = vshrl.u32 %v260, 16
    %v389 = vshrl.u32 %v261, 16
    %v390 = vshrl.u32 %v262, 16
    %v391 = vshrl.u32 %v263, 16
    %v392 = vshrl.u32 %v264, 16
    %v393 = vshrl.u32 %v265, 16
    %v394 = vshrl.u32 %v266, 16
    %v395 = vshrl.u32 %v267, 16
    %v396 = vshrl.u32 %v268, 16
    %v397 = vshrl.u32 %v269, 16
    %v398 = vshrl.u32 %v270, 16
    %v399 = vshrl.u32 %v271, 16
    %v400 = vshrl.u32 %v272, 16
    %v401 = vshrl.u32 %v273, 16
    %v402 = vshrl.u32 %v274, 16
    %v403 = vshrl.u32 %v275, 16
    %v404 = vshrl.u32 %v276, 16
    %v405 = vshrl.u32 %v277, 16
    %v406 = vshrl.u32 %v278, 16
    %v407 = vshrl.u32 %v279, 16
    %v408 = vshrl.u32 %v280, 16
    %v409 = vshrl.u32 %v281, 16
    %v410 = vshrl.u32 %v282, 16
    %v411 = vshrl.u32 %v283, 16
    %v412 = vshrl.u32 %v284, 16
    %v413 = vshrl.u32 %v285, 16
    %v414 = vshrl.u32 %v286, 16
    %v415 = vshrl.u32 %v287, 16
    %v416 = vshrl.u32 %v288, 16
    %v417 = vshrl.u32 %v289, 16
    %v418 = vshrl.u32 %v290, 16
    %v419 = vshrl.u32 %v291, 16
    %v420 = vshrl.u32 %v292, 16
    %v421 = vshrl.u32 %v293, 16
    %v422 = vshrl.u32 %v294, 16
    %v423 = vshrl.u32 %v295, 16
    %v424 = vshrl.u32 %v296, 16
    %v425 = vshrl.u32 %v297, 16
    %v426 = vshrl.u32 %v298, 16
    %v427 = vshrl.u32 %v299, 16
    %v428 = vshrl.u32 %v300, 16
    %v429 = vshrl.u32 %v301, 16
    %v430 = vshrl.u32 %v302, 16
    %v431 = vshrl.u32 %v303, 16
    %v432 = vshrl.u32 %v304, 16
    %v433 = vshrl.u32 %v305, 16
    %v434 = vshrl.u32 %v306, 16
    %v435 = vshrl.u32 %v307, 16
    %v436 = vshrl.u32 %v308, 16
    %v437 = vshrl.u32 %v309, 16
    %v438 = vshrl.u32 %v310, 16
    %v439 = vshrl.u32 %v311, 16
    %v440 = vshrl.u32 %v312, 16
    %v441 = vshrl.u32 %v313, 16
    %v442 = vshrl.u32 %v314, 16
    %v443 = vshrl.u32 %v315, 16
    %v444 = vshrl.u32 %v316, 16
    %v445 = vshrl.u32 %v317, 16
    %v446 = vshrl.u32 %v318, 16
    %v447 = vshrl.u32 %v319, 16
    %v448 = vshrl.u32 %v320, 16
    %v449 = vshrl.u32 %v321, 16
    %v450 = vshrl.u32 %v322, 16
    %v451 = vshrl.u32 %v323, 16
    %v452 = vshrl.u32 %v324, 16
    %v453 = vshrl.u32 %v325, 16
    %v454 = vshrl.u32 %v326, 16
    %v455 = vshrl.u32 %v327, 16
    %v456 = vshrl.u32 %v328, 16
    %v457 = vshrl.u32 %v329, 16
    %v458 = vshrl.u32 %v330, 16
    %v459 = vshrl.u32 %v331, 16
    %v460 = vshrl.u32 %v332, 16
    %v461 = vshrl.u32 %v333, 16
    %v462 = vshrl.u32 %v334, 16
    %v463 = vshrl.u32 %v335, 16
    %v464 = vshrl.u32 %v336, 16
    %v465 = vshrl.u32 %v337, 16
    %v466 = vshrl.u32 %v338, 16
    %v467 = vshrl.u32 %v339, 16
    %v468 = vshrl.u32 %v340, 16
    %v469 = vshrl.u32 %v341, 16
    %v470 = vshrl.u32 %v342, 16
    %v471 = vshrl.u32 %v343, 16
    %v472 = vshrl.u32 %v344, 16
    %v473 = vshrl.u32 %v345, 16
    %v474 = vshrl.u32 %v346, 16
    %v475 = vshrl.u32 %v347, 16
    %v476 = vshrl.u32 %v348, 16
    %v477 = vshrl.u32 %v349, 16
    %v478 = vshrl.u32 %v350, 16
    %v479 = vshrl.u32 %v351, 16
    %v480 = vshrl.u32 %v352, 16
    %v481 = vshrl.u32 %v353, 16
    %v482 = vshrl.u32 %v354, 16
    %v483 = vshrl.u32 %v355, 16
    %v484 = vshrl.u32 %v356, 16
    %v485 = vshrl.u32 %v357, 16
    %v486 = vshrl.u32 %v358, 16
    %v487 = vshrl.u32 %v359, 16
    %v488 = vshrl.u32 %v360, 16
    %v489 = vshrl.u32 %v361, 16
    %v490 = vshrl.u32 %v362, 16
    %v491 = vshrl.u32 %v363, 16
    %v492 = vshrl.u32 %v364, 16
    %v493 = vshrl.u32 %v365, 16
    %v494 = vshrl.u32 %v366, 16
    %v495 = vshrl.u32 %v367, 16
    %v496 = vshrl.u32 %v368, 16
    %v497 = vshrl.u32 %v369, 16
    %v498 = vshrl.u32 %v370, 16
    %v499 = vshrl.u32 %v371, 16
    %v500 = vshrl.u32 %v372, 16
    %v501 = vshrl.u32 %v373, 16
    %v502 = vshrl.u32 %v374, 16
    %v503 = vshrl.u32 %v375, 16
    %v504 = vshrl.u32 %v376, 16
    %v505 = vshrl.u32 %v377, 16
    %v506 = vshrl.u32 %v378, 16
    %v507 = vshrl.u32 %v379, 16
    %v508 = vshrl.u32 %v380, 16
    %v509 = vshrl.u32 %v381, 16
    %v510 = vshrl.u32 %v382, 16
    %v511 = vshrl.u32 %v383, 16
    %v512 = vshrl.u32 %v384, 16
    %v513 = vshrl.u32 %v385, 16
    %v514 = vshrl.u32 %v386, 16
    %v515 = vshrl.u32 %v387, 16
    %v516 = vxor.u32 %v260, %v388
    %v517 = vxor.u32 %v261, %v389
    %v518 = vxor.u32 %v262, %v390
    %v519 = vxor.u32 %v263, %v391
    %v520 = vxor.u32 %v264, %v392
    %v521 = vxor.u32 %v265, %v393
    %v522 = vxor.u32 %v266, %v394
    %v523 = vxor.u32 %v267, %v395
    %v524 = vxor.u32 %v268, %v396
    %v525 = vxor.u32 %v269, %v397
    %v526 = vxor.u32 %v270, %v398
    %v527 = vxor.u32 %v271, %v399
    %v528 = vxor.u32 %v272, %v400
    %v529 = vxor.u32 %v273, %v401
    %v530 = vxor.u32 %v274, %v402
    %v531 = vxor.u32 %v275, %v403
    %v532 = vxor.u32 %v276, %v404
    %v533 = vxor.u32 %v277, %v405
    %v534 = vxor.u32 %v278, %v406
    %v535 = vxor.u32 %v279, %v407
    %v536 = vxor.u32 %v280, %v408
    %v537 = vxor.u32 %v281, %v409
    %v538 = vxor.u32 %v282, %v410
    %v539 = vxor.u32 %v283, %v411
    %v540 = vxor.u32 %v284, %v412
    %v541 = vxor.u32 %v285, %v413
    %v542 = vxor.u32 %v286, %v414
    %v543 = vxor.u32 %v287, %v415
    %v544 = vxor.u32 %v288, %v416
    %v545 = vxor.u32 %v289, %v417
    %v546 = vxor.u32 %v290, %v418
    %v547 = vxor.u32 %v291, %v419
    %v548 = vxor.u32 %v292, %v420
    %v549 = vxor.u32 %v293, %v421
    %v550 = vxor.u32 %v294, %v422
    %v551 = vxor.u32 %v295, %v423
    %v552 = vxor.u32 %v296, %v424
    %v553 = vxor.u32 %v297, %v425
    %v554 = vxor.u32 %v298, %v426
    %v555 = vxor.u32 %v299, %v427
    %v556 = vxor.u32 %v300, %v428
    %v557 = vxor.u32 %v301, %v429
    %v558 = vxor.u32 %v302, %v430
    %v559 = vxor.u32 %v303, %v431
    %v560 = vxor.u32 %v304, %v432
    %v561 = vxor.u32 %v305, %v433
    %v562 = vxor.u32 %v306, %v434
    %v563 = vxor.u32 %v307, %v435
    %v564 = vxor.u32 %v308, %v436
    %v565 = vxor.u32 %v309, %v437
    %v566 = vxor.u32 %v310, %v438
    %v567 = vxor.u32 %v311, %v439
    %v568 = vxor.u32 %v312, %v440
    %v569 = vxor.u32 %v313, %v441
    %v570 = vxor.u32 %v314, %v442
    %v571 = vxor.u32 %v315, %v443
    %v572 = vxor.u32 %v316, %v444
    %v573 = vxor.u32 %v317, %v445
    %v574 = vxor.u32 %v318, %v446
    %v575 = vxor.u32 %v319, %v447
    %v576 = vxor.u32 %v320, %v448
    %v577 = vxor.u32 %v321, %v449
    %v578 = vxor.u32 %v322, %v450
    %v579 = vxor.u32 %v323, %v451
    %v580 = vxor.u32 %v324, %v452
    %v581 = vxor.u32 %v325, %v453
    %v582 = vxor.u32 %v326, %v454
    %v583 = vxor.u32 %v327, %v455
    %v584 = vxor.u32 %v328, %v456
    %v585 = vxor.u32 %v329, %v457
    %v586 = vxor.u32 %v330, %v458
    %v587 = vxor.u32 %v331, %v459
    %v588 = vxor.u32 %v332, %v460
    %v589 = vxor.u32 %v333, %v461
    %v590 = vxor.u32 %v334, %v462
    %v591 = vxor.u32 %v335, %v463
    %v592 = vxor.u32 %v336, %v464
    %v593 = vxor.u32 %v337, %v465
    %v594 = vxor.u32 %v338, %v466
    %v595 = vxor.u32 %v339, %v467
    %v596 = vxor.u32 %v340, %v468
    %v597 = vxor.u32 %v341, %v469
    %v598 = vxor.u32 %v342, %v470
    %v599 = vxor.u32 %v343, %v471
    %v600 = vxor.u32 %v344, %v472
    %v601 = vxor.u32 %v345, %v473
    %v602 = vxor.u32 %v346, %v474
    %v603 = vxor.u32 %v347, %v475
    %v604 = vxor.u32 %v348, %v476
    %v605 = vxor.u32 %v349, %v477
    %v606 = vxor.u32 %v350, %v478
    %v607 = vxor.u32 %v351, %v479
    %v608 = vxor.u32 %v352, %v480
    %v609 = vxor.u32 %v353, %v481
    %v610 = vxor.u32 %v354, %v482
    %v611 = vxor.u32 %v355, %v483
    %v612 = vxor.u32 %v356, %v484
    %v613 = vxor.u32 %v357, %v485
    %v614 = vxor.u32 %v358, %v486
    %v615 = vxor.u32 %v359, %v487
    %v616 = vxor.u32 %v360, %v488
    %v617 = vxor.u32 %v361, %v489
    %v618 = vxor.u32 %v362, %v490
    %v619 = vxor.u32 %v363, %v491
    %v620 = vxor.u32 %v364, %v492
    %v621 = vxor.u32 %v365, %v493
    %v622 = vxor.u32 %v366, %v494
    %v623 = vxor.u32 %v367, %v495
    %v624 = vxor.u32 %v368, %v496
    %v625 = vxor.u32 %v369, %v497
    %v626 = vxor.u32 %v370, %v498
    %v627 = vxor.u32 %v371, %v499
    %v628 = vxor.u32 %v372, %v500
    %v629 = vxor.u32 %v373, %v501
    %v630 = vxor.u32 %v374, %v502
    %v631 = vxor.u32 %v375, %v503
    %v632 = vxor.u32 %v376, %v504
    %v633 = vxor.u32 %v377, %v505
    %v634 = vxor.u32 %v378, %v506
    %v635 = vxor.u32 %v379, %v507
    %v636 = vxor.u32 %v380, %v508
    %v637 = vxor.u32 %v381, %v509
    %v638 = vxor.u32 %v382, %v510
    %v639 = vxor.u32 %v383, %v511
    %v640 = vxor.u32 %v384, %v512
    %v641 = vxor.u32 %v385, %v513
    %v642 = vxor.u32 %v386, %v514
    %v643 = vxor.u32 %v387, %v515
    %v644 = vmul.u32 %v516, 2146121005
    %v645 = vmul.u32 %v517, 2146121005
    %v646 = vmul.u32 %v518, 2146121005
    %v647 = vmul.u32 %v519, 2146121005
    %v648 = vmul.u32 %v520, 2146121005
    %v649 = vmul.u32 %v521, 2146121005
    %v650 = vmul.u32 %v522, 2146121005
    %v651 = vmul.u32 %v523, 2146121005
    %v652 = vmul.u32 %v524, 2146121005
    %v653 = vmul.u32 %v525, 2146121005
    %v654 = vmul.u32 %v526, 2146121005
    %v655 = vmul.u32 %v527, 2146121005
    %v656 = vmul.u32 %v528, 2146121005
    %v657 = vmul.u32 %v529, 2146121005
    %v658 = vmul.u32 %v530, 2146121005
    %v659 = vmul.u32 %v531, 2146121005
    %v660 = vmul.u32 %v532, 2146121005
    %v661 = vmul.u32 %v533, 2146121005
    %v662 = vmul.u32 %v534, 2146121005
    %v663 = vmul.u32 %v535, 2146121005
    %v664 = vmul.u32 %v536, 2146121005
    %v665 = vmul.u32 %v537, 2146121005
    %v666 = vmul.u32 %v538, 2146121005
    %v667 = vmul.u32 %v539, 2146121005
    %v668 = vmul.u32 %v540, 2146121005
    %v669 = vmul.u32 %v541, 2146121005
    %v670 = vmul.u32 %v542, 2146121005
    %v671 = vmul.u32 %v543, 2146121005
    %v672 = vmul.u32 %v544, 2146121005
    %v673 = vmul.u32 %v545, 2146121005
    %v674 = vmul.u32 %v546, 2146121005
    %v675 = vmul.u32 %v547, 2146121005
    %v676 = vmul.u32 %v548, 2146121005
    %v677 = vmul.u32 %v549, 2146121005
    %v678 = vmul.u32 %v550, 2146121005
    %v679 = vmul.u32 %v551, 2146121005
    %v680 = vmul.u32 %v552, 2146121005
    %v681 = vmul.u32 %v553, 2146121005
    %v682 = vmul.u32 %v554, 2146121005
    %v683 = vmul.u32 %v555, 2146121005
    %v684 = vmul.u32 %v556, 2146121005
    %v685 = vmul.u32 %v557, 2146121005
    %v686 = vmul.u32 %v558, 2146121005
    %v687 = vmul.u32 %v559, 2146121005
    %v688 = vmul.u32 %v560, 2146121005
    %v689 = vmul.u32 %v561, 2146121005
    %v690 = vmul.u32 %v562, 2146121005
    %v691 = vmul.u32 %v563, 2146121005
    %v692 = vmul.u32 %v564, 2146121005
    %v693 = vmul.u32 %v565, 2146121005
    %v694 = vmul.u32 %v566, 2146121005
    %v695 = vmul.u32 %v567, 2146121005
    %v696 = vmul.u32 %v568, 2146121005
    %v697 = vmul.u32 %v569, 2146121005
    %v698 = vmul.u32 %v570, 2146121005
    %v699 = vmul.u32 %v571, 2146121005
    %v700 = vmul.u32 %v572, 2146121005
    %v701 = vmul.u32 %v573, 2146121005
    %v702 = vmul.u32 %v574, 2146121005
    %v703 = vmul.u32 %v575, 2146121005
    %v704 = vmul.u32 %v576, 2146121005
    %v705 = vmul.u32 %v577, 2146121005
    %v706 = vmul.u32 %v578, 2146121005
    %v707 = vmul.u32 %v579, 2146121005
    %v708 = vmul.u32 %v580, 2146121005
    %v709 = vmul.u32 %v581, 2146121005
    %v710 = vmul.u32 %v582, 2146121005
    %v711 = vmul.u32 %v583, 2146121005
    %v712 = vmul.u32 %v584, 2146121005
    %v713 = vmul.u32 %v585, 2146121005
    %v714 = vmul.u32 %v586, 2146121005
    %v715 = vmul.u32 %v587, 2146121005
    %v716 = vmul.u32 %v588, 2146121005
    %v717 = vmul.u32 %v589, 2146121005
    %v718 = vmul.u32 %v590, 2146121005
    %v719 = vmul.u32 %v591, 2146121005
    %v720 = vmul.u32 %v592, 2146121005
    %v721 = vmul.u32 %v593, 2146121005
    %v722 = vmul.u32 %v594, 2146121005
    %v723 = vmul.u32 %v595, 2146121005
    %v724 = vmul.u32 %v596, 2146121005
    %v725 = vmul.u32 %v597, 2146121005
    %v726 = vmul.u32 %v598, 2146121005
    %v727 = vmul.u32 %v599, 2146121005
    %v728 = vmul.u32 %v600, 2146121005
    %v729 = vmul.u32 %v601, 2146121005
    %v730 = vmul.u32 %v602, 2146121005
    %v731 = vmul.u32 %v603, 2146121005
    %v732 = vmul.u32 %v604, 2146121005
    %v733 = vmul.u32 %v605, 2146121005
    %v734 = vmul.u32 %v606, 2146121005
    %v735 = vmul.u32 %v607, 2146121005
    %v736 = vmul.u32 %v608, 2146121005
    %v737 = vmul.u32 %v609, 2146121005
    %v738 = vmul.u32 %v610, 2146121005
    %v739 = vmul.u32 %v611, 2146121005
    %v740 = vmul.u32 %v612, 2146121005
    %v741 = vmul.u32 %v613, 2146121005
    %v742 = vmul.u32 %v614, 2146121005
    %v743 = vmul.u32 %v615, 2146121005
    %v744 = vmul.u32 %v616, 2146121005
    %v745 = vmul.u32 %v617, 2146121005
    %v746 = vmul.u32 %v618, 2146121005
    %v747 = vmul.u32 %v619, 2146121005
    %v748 = vmul.u32 %v620, 2146121005
    %v749 = vmul.u32 %v621, 2146121005
    %v750 = vmul.u32 %v622, 2146121005
    %v751 = vmul.u32 %v623, 2146121005
    %v752 = vmul.u32 %v624, 2146121005
    %v753 = vmul.u32 %v625, 2146121005
    %v754 = vmul.u32 %v626, 2146121005
    %v755 = vmul.u32 %v627, 2146121005
    %v756 = vmul.u32 %v628, 2146121005
    %v757 = vmul.u32 %v629, 2146121005
    %v758 = vmul.u32 %v630, 2146121005
    %v759 = vmul.u32 %v631, 2146121005
    %v760 = vmul.u32 %v632, 2146121005
    %v761 = vmul.u32 %v633, 2146121005
    %v762 = vmul.u32 %v634, 2146121005
    %v763 = vmul.u32 %v635, 2146121005
    %v764 = vmul.u32 %v636, 2146121005
    %v765 = vmul.u32 %v637, 2146121005
    %v766 = vmul.u32 %v638, 2146121005
    %v767 = vmul.u32 %v639, 2146121005
    %v768 = vmul.u32 %v640, 2146121005
    %v769 = vmul.u32 %v641, 2146121005
    %v770 = vmul.u32 %v642, 2146121005
    %v771 = vmul.u32 %v643, 2146121005
    %v772 = vshrl.u32 %v644, 15
    %v773 = vshrl.u32 %v645, 15
    %v774 = vshrl.u32 %v646, 15
    %v775 = vshrl.u32 %v647, 15
    %v776 = vshrl.u32 %v648, 15
    %v777 = vshrl.u32 %v649, 15
    %v778 = vshrl.u32 %v650, 15
    %v779 = vshrl.u32 %v651, 15
    %v780 = vshrl.u32 %v652, 15
    %v781 = vshrl.u32 %v653, 15
    %v782 = vshrl.u32 %v654, 15
    %v783 = vshrl.u32 %v655, 15
    %v784 = vshrl.u32 %v656, 15
    %v785 = vshrl.u32 %v657, 15
    %v786 = vshrl.u32 %v658, 15
    %v787 = vshrl.u32 %v659, 15
    %v788 = vshrl.u32 %v660, 15
    %v789 = vshrl.u32 %v661, 15
    %v790 = vshrl.u32 %v662, 15
    %v791 = vshrl.u32 %v663, 15
    %v792 = vshrl.u32 %v664, 15
    %v793 = vshrl.u32 %v665, 15
    %v794 = vshrl.u32 %v666, 15
    %v795 = vshrl.u32 %v667, 15
    %v796 = vshrl.u32 %v668, 15
    %v797 = vshrl.u32 %v669, 15
    %v798 = vshrl.u32 %v670, 15
    %v799 = vshrl.u32 %v671, 15
    %v800 = vshrl.u32 %v672, 15
    %v801 = vshrl.u32 %v673, 15
    %v802 = vshrl.u32 %v674, 15
    %v803 = vshrl.u32 %v675, 15
    %v804 = vshrl.u32 %v676, 15
    %v805 = vshrl.u32 %v677, 15
    %v806 = vshrl.u32 %v678, 15
    %v807 = vshrl.u32 %v679, 15
    %v808 = vshrl.u32 %v680, 15
    %v809 = vshrl.u32 %v681, 15
    %v810 = vshrl.u32 %v682, 15
    %v811 = vshrl.u32 %v683, 15
    %v812 = vshrl.u32 %v684, 15
    %v813 = vshrl.u32 %v685, 15
    %v814 = vshrl.u32 %v686, 15
    %v815 = vshrl.u32 %v687, 15
    %v816 = vshrl.u32 %v688, 15
    %v817 = vshrl.u32 %v689, 15
    %v818 = vshrl.u32 %v690, 15
    %v819 = vshrl.u32 %v691, 15
    %v820 = vshrl.u32 %v692, 15
    %v821 = vshrl.u32 %v693, 15
    %v822 = vshrl.u32 %v694, 15
    %v823 = vshrl.u32 %v695, 15
    %v824 = vshrl.u32 %v696, 15
    %v825 = vshrl.u32 %v697, 15
    %v826 = vshrl.u32 %v698, 15
    %v827 = vshrl.u32 %v699, 15
    %v828 = vshrl.u32 %v700, 15
    %v829 = vshrl.u32 %v701, 15
    %v830 = vshrl.u32 %v702, 15
    %v831 = vshrl.u32 %v703, 15
    %v832 = vshrl.u32 %v704, 15
    %v833 = vshrl.u32 %v705, 15
    %v834 = vshrl.u32 %v706, 15
    %v835 = vshrl.u32 %v707, 15
    %v836 = vshrl.u32 %v708, 15
    %v837 = vshrl.u32 %v709, 15
    %v838 = vshrl.u32 %v710, 15
    %v839 = vshrl.u32 %v711, 15
    %v840 = vshrl.u32 %v712, 15
    %v841 = vshrl.u32 %v713, 15
    %v842 = vshrl.u32 %v714, 15
    %v843 = vshrl.u32 %v715, 15
    %v844 = vshrl.u32 %v716, 15
    %v845 = vshrl.u32 %v717, 15
    %v846 = vshrl.u32 %v718, 15
    %v847 = vshrl.u32 %v719, 15
    %v848 = vshrl.u32 %v720, 15
    %v849 = vshrl.u32 %v721, 15
    %v850 = vshrl.u32 %v722, 15
    %v851 = vshrl.u32 %v723, 15
    %v852 = vshrl.u32 %v724, 15
    %v853 = vshrl.u32 %v725, 15
    %v854 = vshrl.u32 %v726, 15
    %v855 = vshrl.u32 %v727, 15
    %v856 = vshrl.u32 %v728, 15
    %v857 = vshrl.u32 %v729, 15
    %v858 = vshrl.u32 %v730, 15
    %v859 = vshrl.u32 %v731, 15
    %v860 = vshrl.u32 %v732, 15
    %v861 = vshrl.u32 %v733, 15
    %v862 = vshrl.u32 %v734, 15
    %v863 = vshrl.u32 %v735, 15
    %v864 = vshrl.u32 %v736, 15
    %v865 = vshrl.u32 %v737, 15
    %v866 = vshrl.u32 %v738, 15
    %v867 = vshrl.u32 %v739, 15
    %v868 = vshrl.u32 %v740, 15
    %v869 = vshrl.u32 %v741, 15
    %v870 = vshrl.u32 %v742, 15
    %v871 = vshrl.u32 %v743, 15
    %v872 = vshrl.u32 %v744, 15
    %v873 = vshrl.u32 %v745, 15
    %v874 = vshrl.u32 %v746, 15
    %v875 = vshrl.u32 %v747, 15
    %v876 = vshrl.u32 %v748, 15
    %v877 = vshrl.u32 %v749, 15
    %v878 = vshrl.u32 %v750, 15
    %v879 = vshrl.u32 %v751, 15
    %v880 = vshrl.u32 %v752, 15
    %v881 = vshrl.u32 %v753, 15
    %v882 = vshrl.u32 %v754, 15
    %v883 = vshrl.u32 %v755, 15
    %v884 = vshrl.u32 %v756, 15
    %v885 = vshrl.u32 %v757, 15
    %v886 = vshrl.u32 %v758, 15
    %v887 = vshrl.u32 %v759, 15
    %v888 = vshrl.u32 %v760, 15
    %v889 = vshrl.u32 %v761, 15
    %v890 = vshrl.u32 %v762, 15
    %v891 = vshrl.u32 %v763, 15
    %v892 = vshrl.u32 %v764, 15
    %v893 = vshrl.u32 %v765, 15
    %v894 = vshrl.u32 %v766, 15
    %v895 = vshrl.u32 %v767, 15
    %v896 = vshrl.u32 %v768, 15
    %v897 = vshrl.u32 %v769, 15
    %v898 = vshrl.u32 %v770, 15
    %v899 = vshrl.u32 %v771, 15
    %v900 = vxor.u32 %v644, %v772
    %v901 = vxor.u32 %v645, %v773
    %v902 = vxor.u32 %v646, %v774
    %v903 = vxor.u32 %v647, %v775
    %v904 = vxor.u32 %v648, %v776
    %v905 = vxor.u32 %v649, %v777
    %v906 = vxor.u32 %v650, %v778
    %v907 = vxor.u32 %v651, %v779
    %v908 = vxor.u32 %v652, %v780
    %v909 = vxor.u32 %v653, %v781
    %v910 = vxor.u32 %v654, %v782
    %v911 = vxor.u32 %v655, %v783
    %v912 = vxor.u32 %v656, %v784
    %v913 = vxor.u32 %v657, %v785
    %v914 = vxor.u32 %v658, %v786
    %v915 = vxor.u32 %v659, %v787
    %v916 = vxor.u32 %v660, %v788
    %v917 = vxor.u32 %v661, %v789
    %v918 = vxor.u32 %v662, %v790
    %v919 = vxor.u32 %v663, %v791
    %v920 = vxor.u32 %v664, %v792
    %v921 = vxor.u32 %v665, %v793
    %v922 = vxor.u32 %v666, %v794
    %v923 = vxor.u32 %v667, %v795
    %v924 = vxor.u32 %v668, %v796
    %v925 = vxor.u32 %v669, %v797
    %v926 = vxor.u32 %v670, %v798
    %v927 = vxor.u32 %v671, %v799
    %v928 = vxor.u32 %v672, %v800
    %v929 = vxor.u32 %v673, %v801
    %v930 = vxor.u32 %v674, %v802
    %v931 = vxor.u32 %v675, %v803
    %v932 = vxor.u32 %v676, %v804
    %v933 = vxor.u32 %v677, %v805
    %v934 = vxor.u32 %v678, %v806
    %v935 = vxor.u32 %v679, %v807
    %v936 = vxor.u32 %v680, %v808
    %v937 = vxor.u32 %v681, %v809
    %v938 = vxor.u32 %v682, %v810
    %v939 = vxor.u32 %v683, %v811
    %v940 = vxor.u32 %v684, %v812
    %v941 = vxor.u32 %v685, %v813
    %v942 = vxor.u32 %v686, %v814
    %v943 = vxor.u32 %v687, %v815
    %v944 = vxor.u32 %v688, %v816
    %v945 = vxor.u32 %v689, %v817
    %v946 = vxor.u32 %v690, %v818
    %v947 = vxor.u32 %v691, %v819
    %v948 = vxor.u32 %v692, %v820
    %v949 = vxor.u32 %v693, %v821
    %v950 = vxor.u32 %v694, %v822
    %v951 = vxor.u32 %v695, %v823
    %v952 = vxor.u32 %v696, %v824
    %v953 = vxor.u32 %v697, %v825
    %v954 = vxor.u32 %v698, %v826
    %v955 = vxor.u32 %v699, %v827
    %v956 = vxor.u32 %v700, %v828
    %v957 = vxor.u32 %v701, %v829
    %v958 = vxor.u32 %v702, %v830
    %v959 = vxor.u32 %v703, %v831
    %v960 = vxor.u32 %v704, %v832
    %v961 = vxor.u32 %v705, %v833
    %v962 = vxor.u32 %v706, %v834
    %v963 = vxor.u32 %v707, %v835
    %v964 = vxor.u32 %v708, %v836
    %v965 = vxor.u32 %v709, %v837
    %v966 = vxor.u32 %v710, %v838
    %v967 = vxor.u32 %v711, %v839
    %v968 = vxor.u32 %v712, %v840
    %v969 = vxor.u32 %v713, %v841
    %v970 = vxor.u32 %v714, %v842
    %v971 = vxor.u32 %v715, %v843
    %v972 = vxor.u32 %v716, %v844
    %v973 = vxor.u32 %v717, %v845
    %v974 = vxor.u32 %v718, %v846
    %v975 = vxor.u32 %v719, %v847
    %v976 = vxor.u32 %v720, %v848
    %v977 = vxor.u32 %v721, %v849
    %v978 = vxor.u32 %v722, %v850
    %v979 = vxor.u32 %v723, %v851
    %v980 = vxor.u32 %v724, %v852
    %v981 = vxor.u32 %v725, %v853
    %v982 = vxor.u32 %v726, %v854
    %v983 = vxor.u32 %v727, %v855
    %v984 = vxor.u32 %v728, %v856
    %v985 = vxor.u32 %v729, %v857
    %v986 = vxor.u32 %v730, %v858
    %v987 = vxor.u32 %v731, %v859
    %v988 = vxor.u32 %v732, %v860
    %v989 = vxor.u32 %v733, %v861
    %v990 = vxor.u32 %v734, %v862
    %v991 = vxor.u32 %v735, %v863
    %v992 = vxor.u32 %v736, %v864
    %v993 = vxor.u32 %v737, %v865
    %v994 = vxor.u32 %v738, %v866
    %v995 = vxor.u32 %v739, %v867
    %v996 = vxor.u32 %v740, %v868
    %v997 = vxor.u32 %v741, %v869
    %v998 = vxor.u32 %v742, %v870
    %v999 = vxor.u32 %v743, %v871
    %v1000 = vxor.u32 %v744, %v872
    %v1001 = vxor.u32 %v745, %v873
    %v1002 = vxor.u32 %v746, %v874
    %v1003 = vxor.u32 %v747, %v875
    %v1004 = vxor.u32 %v748, %v876
    %v1005 = vxor.u32 %v749, %v877
    %v1006 = vxor.u32 %v750, %v878
    %v1007 = vxor.u32 %v751, %v879
    %v1008 = vxor.u32 %v752, %v880
    %v1009 = vxor.u32 %v753, %v881
    %v1010 = vxor.u32 %v754, %v882
    %v1011 = vxor.u32 %v755, %v883
    %v1012 = vxor.u32 %v756, %v884
    %v1013 = vxor.u32 %v757, %v885
    %v1014 = vxor.u32 %v758, %v886
    %v1015 = vxor.u32 %v759, %v887
    %v1016 = vxor.u32 %v760, %v888
    %v1017 = vxor.u32 %v761, %v889
    %v1018 = vxor.u32 %v762, %v890
    %v1019 = vxor.u32 %v763, %v891
    %v1020 = vxor.u32 %v764, %v892
    %v1021 = vxor.u32 %v765, %v893
    %v1022 = vxor.u32 %v766, %v894
    %v1023 = vxor.u32 %v767, %v895
    %v1024 = vxor.u32 %v768, %v896
    %v1025 = vxor.u32 %v769, %v897
    %v1026 = vxor.u32 %v770, %v898
    %v1027 = vxor.u32 %v771, %v899
    %v1028 = vmul.u32 %v900, 2221713035
    %v1029 = vmul.u32 %v901, 2221713035
    %v1030 = vmul.u32 %v902, 2221713035
    %v1031 = vmul.u32 %v903, 2221713035
    %v1032 = vmul.u32 %v904, 2221713035
    %v1033 = vmul.u32 %v905, 2221713035
    %v1034 = vmul.u32 %v906, 2221713035
    %v1035 = vmul.u32 %v907, 2221713035
    %v1036 = vmul.u32 %v908, 2221713035
    %v1037 = vmul.u32 %v909, 2221713035
    %v1038 = vmul.u32 %v910, 2221713035
    %v1039 = vmul.u32 %v911, 2221713035
    %v1040 = vmul.u32 %v912, 2221713035
    %v1041 = vmul.u32 %v913, 2221713035
    %v1042 = vmul.u32 %v914, 2221713035
    %v1043 = vmul.u32 %v915, 2221713035
    %v1044 = vmul.u32 %v916, 2221713035
    %v1045 = vmul.u32 %v917, 2221713035
    %v1046 = vmul.u32 %v918, 2221713035
    %v1047 = vmul.u32 %v919, 2221713035
    %v1048 = vmul.u32 %v920, 2221713035
    %v1049 = vmul.u32 %v921, 2221713035
    %v1050 = vmul.u32 %v922, 2221713035
    %v1051 = vmul.u32 %v923, 2221713035
    %v1052 = vmul.u32 %v924, 2221713035
    %v1053 = vmul.u32 %v925, 2221713035
    %v1054 = vmul.u32 %v926, 2221713035
    %v1055 = vmul.u32 %v927, 2221713035
    %v1056 = vmul.u32 %v928, 2221713035
    %v1057 = vmul.u32 %v929, 2221713035
    %v1058 = vmul.u32 %v930, 2221713035
    %v1059 = vmul.u32 %v931, 2221713035
    %v1060 = vmul.u32 %v932, 2221713035
    %v1061 = vmul.u32 %v933, 2221713035
    %v1062 = vmul.u32 %v934, 2221713035
    %v1063 = vmul.u32 %v935, 2221713035
    %v1064 = vmul.u32 %v936, 2221713035
    %v1065 = vmul.u32 %v937, 2221713035
    %v1066 = vmul.u32 %v938, 2221713035
    %v1067 = vmul.u32 %v939, 2221713035
    %v1068 = vmul.u32 %v940, 2221713035
    %v1069 = vmul.u32 %v941, 2221713035
    %v1070 = vmul.u32 %v942, 2221713035
    %v1071 = vmul.u32 %v943, 2221713035
    %v1072 = vmul.u32 %v944, 2221713035
    %v1073 = vmul.u32 %v945, 2221713035
    %v1074 = vmul.u32 %v946, 2221713035
    %v1075 = vmul.u32 %v947, 2221713035
    %v1076 = vmul.u32 %v948, 2221713035
    %v1077 = vmul.u32 %v949, 2221713035
    %v1078 = vmul.u32 %v950, 2221713035
    %v1079 = vmul.u32 %v951, 2221713035
    %v1080 = vmul.u32 %v952, 2221713035
    %v1081 = vmul.u32 %v953, 2221713035
    %v1082 = vmul.u32 %v954, 2221713035
    %v1083 = vmul.u32 %v955, 2221713035
    %v1084 = vmul.u32 %v956, 2221713035
    %v1085 = vmul.u32 %v957, 2221713035
    %v1086 = vmul.u32 %v958, 2221713035
    %v1087 = vmul.u32 %v959, 2221713035
    %v1088 = vmul.u32 %v960, 2221713035
    %v1089 = vmul.u32 %v961, 2221713035
    %v1090 = vmul.u32 %v962, 2221713035
    %v1091 = vmul.u32 %v963, 2221713035
    %v1092 = vmul.u32 %v964, 2221713035
    %v1093 = vmul.u32 %v965, 2221713035
    %v1094 = vmul.u32 %v966, 2221713035
    %v1095 = vmul.u32 %v967, 2221713035
    %v1096 = vmul.u32 %v968, 2221713035
    %v1097 = vmul.u32 %v969, 2221713035
    %v1098 = vmul.u32 %v970, 2221713035
    %v1099 = vmul.u32 %v971, 2221713035
    %v1100 = vmul.u32 %v972, 2221713035
    %v1101 = vmul.u32 %v973, 2221713035
    %v1102 = vmul.u32 %v974, 2221713035
    %v1103 = vmul.u32 %v975, 2221713035
    %v1104 = vmul.u32 %v976, 2221713035
    %v1105 = vmul.u32 %v977, 2221713035
    %v1106 = vmul.u32 %v978, 2221713035
    %v1107 = vmul.u32 %v979, 2221713035
    %v1108 = vmul.u32 %v980, 2221713035
    %v1109 = vmul.u32 %v981, 2221713035
    %v1110 = vmul.u32 %v982, 2221713035
    %v1111 = vmul.u32 %v983, 2221713035
    %v1112 = vmul.u32 %v984, 2221713035
    %v1113 = vmul.u32 %v985, 2221713035
    %v1114 = vmul.u32 %v986, 2221713035
    %v1115 = vmul.u32 %v987, 2221713035
    %v1116 = vmul.u32 %v988, 2221713035
    %v1117 = vmul.u32 %v989, 2221713035
    %v1118 = vmul.u32 %v990, 2221713035
    %v1119 = vmul.u32 %v991, 2221713035
    %v1120 = vmul.u32 %v992, 2221713035
    %v1121 = vmul.u32 %v993, 2221713035
    %v1122 = vmul.u32 %v994, 2221713035
    %v1123 = vmul.u32 %v995, 2221713035
    %v1124 = vmul.u32 %v996, 2221713035
    %v1125 = vmul.u32 %v997, 2221713035
    %v1126 = vmul.u32 %v998, 2221713035
    %v1127 = vmul.u32 %v999, 2221713035
    %v1128 = vmul.u32 %v1000, 2221713035
    %v1129 = vmul.u32 %v1001, 2221713035
    %v1130 = vmul.u32 %v1002, 2221713035
    %v1131 = vmul.u32 %v1003, 2221713035
    %v1132 = vmul.u32 %v1004, 2221713035
    %v1133 = vmul.u32 %v1005, 2221713035
    %v1134 = vmul.u32 %v1006, 2221713035
    %v1135 = vmul.u32 %v1007, 2221713035
    %v1136 = vmul.u32 %v1008, 2221713035
    %v1137 = vmul.u32 %v1009, 2221713035
    %v1138 = vmul.u32 %v1010, 2221713035
    %v1139 = vmul.u32 %v1011, 2221713035
    %v1140 = vmul.u32 %v1012, 2221713035
    %v1141 = vmul.u32 %v1013, 2221713035
    %v1142 = vmul.u32 %v1014, 2221713035
    %v1143 = vmul.u32 %v1015, 2221713035
    %v1144 = vmul.u32 %v1016, 2221713035
    %v1145 = vmul.u32 %v1017, 2221713035
    %v1146 = vmul.u32 %v1018, 2221713035
    %v1147 = vmul.u32 %v1019, 2221713035
    %v1148 = vmul.u32 %v1020, 2221713035
    %v1149 = vmul.u32 %v1021, 2221713035
    %v1150 = vmul.u32 %v1022, 2221713035
    %v1151 = vmul.u32 %v1023, 2221713035
    %v1152 = vmul.u32 %v1024, 2221713035
    %v1153 = vmul.u32 %v1025, 2221713035
    %v1154 = vmul.u32 %v1026, 2221713035
    %v1155 = vmul.u32 %v1027, 2221713035
    %v1156 = vshrl.u32 %v1028, 16
    %v1157 = vshrl.u32 %v1029, 16
    %v1158 = vshrl.u32 %v1030, 16
    %v1159 = vshrl.u32 %v1031, 16
    %v1160 = vshrl.u32 %v1032, 16
    %v1161 = vshrl.u32 %v1033, 16
    %v1162 = vshrl.u32 %v1034, 16
    %v1163 = vshrl.u32 %v1035, 16
    %v1164 = vshrl.u32 %v1036, 16
    %v1165 = vshrl.u32 %v1037, 16
    %v1166 = vshrl.u32 %v1038, 16
    %v1167 = vshrl.u32 %v1039, 16
    %v1168 = vshrl.u32 %v1040, 16
    %v1169 = vshrl.u32 %v1041, 16
    %v1170 = vshrl.u32 %v1042, 16
    %v1171 = vshrl.u32 %v1043, 16
    %v1172 = vshrl.u32 %v1044, 16
    %v1173 = vshrl.u32 %v1045, 16
    %v1174 = vshrl.u32 %v1046, 16
    %v1175 = vshrl.u32 %v1047, 16
    %v1176 = vshrl.u32 %v1048, 16
    %v1177 = vshrl.u32 %v1049, 16
    %v1178 = vshrl.u32 %v1050, 16
    %v1179 = vshrl.u32 %v1051, 16
    %v1180 = vshrl.u32 %v1052, 16
    %v1181 = vshrl.u32 %v1053, 16
    %v1182 = vshrl.u32 %v1054, 16
    %v1183 = vshrl.u32 %v1055, 16
    %v1184 = vshrl.u32 %v1056, 16
    %v1185 = vshrl.u32 %v1057, 16
    %v1186 = vshrl.u32 %v1058, 16
    %v1187 = vshrl.u32 %v1059, 16
    %v1188 = vshrl.u32 %v1060, 16
    %v1189 = vshrl.u32 %v1061, 16
    %v1190 = vshrl.u32 %v1062, 16
    %v1191 = vshrl.u32 %v1063, 16
    %v1192 = vshrl.u32 %v1064, 16
    %v1193 = vshrl.u32 %v1065, 16
    %v1194 = vshrl.u32 %v1066, 16
    %v1195 = vshrl.u32 %v1067, 16
    %v1196 = vshrl.u32 %v1068, 16
    %v1197 = vshrl.u32 %v1069, 16
    %v1198 = vshrl.u32 %v1070, 16
    %v1199 = vshrl.u32 %v1071, 16
    %v1200 = vshrl.u32 %v1072, 16
    %v1201 = vshrl.u32 %v1073, 16
    %v1202 = vshrl.u32 %v1074, 16
    %v1203 = vshrl.u32 %v1075, 16
    %v1204 = vshrl.u32 %v1076, 16
    %v1205 = vshrl.u32 %v1077, 16
    %v1206 = vshrl.u32 %v1078, 16
    %v1207 = vshrl.u32 %v1079, 16
    %v1208 = vshrl.u32 %v1080, 16
    %v1209 = vshrl.u32 %v1081, 16
    %v1210 = vshrl.u32 %v1082, 16
    %v1211 = vshrl.u32 %v1083, 16
    %v1212 = vshrl.u32 %v1084, 16
    %v1213 = vshrl.u32 %v1085, 16
    %v1214 = vshrl.u32 %v1086, 16
    %v1215 = vshrl.u32 %v1087, 16
    %v1216 = vshrl.u32 %v1088, 16
    %v1217 = vshrl.u32 %v1089, 16
    %v1218 = vshrl.u32 %v1090, 16
    %v1219 = vshrl.u32 %v1091, 16
    %v1220 = vshrl.u32 %v1092, 16
    %v1221 = vshrl.u32 %v1093, 16
    %v1222 = vshrl.u32 %v1094, 16
    %v1223 = vshrl.u32 %v1095, 16
    %v1224 = vshrl.u32 %v1096, 16
    %v1225 = vshrl.u32 %v1097, 16
    %v1226 = vshrl.u32 %v1098, 16
    %v1227 = vshrl.u32 %v1099, 16
    %v1228 = vshrl.u32 %v1100, 16
    %v1229 = vshrl.u32 %v1101, 16
    %v1230 = vshrl.u32 %v1102, 16
    %v1231 = vshrl.u32 %v1103, 16
    %v1232 = vshrl.u32 %v1104, 16
    %v1233 = vshrl.u32 %v1105, 16
    %v1234 = vshrl.u32 %v1106, 16
    %v1235 = vshrl.u32 %v1107, 16
    %v1236 = vshrl.u32 %v1108, 16
    %v1237 = vshrl.u32 %v1109, 16
    %v1238 = vshrl.u32 %v1110, 16
    %v1239 = vshrl.u32 %v1111, 16
    %v1240 = vshrl.u32 %v1112, 16
    %v1241 = vshrl.u32 %v1113, 16
    %v1242 = vshrl.u32 %v1114, 16
    %v1243 = vshrl.u32 %v1115, 16
    %v1244 = vshrl.u32 %v1116, 16
    %v1245 = vshrl.u32 %v1117, 16
    %v1246 = vshrl.u32 %v1118, 16
    %v1247 = vshrl.u32 %v1119, 16
    %v1248 = vshrl.u32 %v1120, 16
    %v1249 = vshrl.u32 %v1121, 16
    %v1250 = vshrl.u32 %v1122, 16
    %v1251 = vshrl.u32 %v1123, 16
    %v1252 = vshrl.u32 %v1124, 16
    %v1253 = vshrl.u32 %v1125, 16
    %v1254 = vshrl.u32 %v1126, 16
    %v1255 = vshrl.u32 %v1127, 16
    %v1256 = vshrl.u32 %v1128, 16
    %v1257 = vshrl.u32 %v1129, 16
    %v1258 = vshrl.u32 %v1130, 16
    %v1259 = vshrl.u32 %v1131, 16
    %v1260 = vshrl.u32 %v1132, 16
    %v1261 = vshrl.u32 %v1133, 16
    %v1262 = vshrl.u32 %v1134, 16
    %v1263 = vshrl.u32 %v1135, 16
    %v1264 = vshrl.u32 %v1136, 16
    %v1265 = vshrl.u32 %v1137, 16
    %v1266 = vshrl.u32 %v1138, 16
    %v1267 = vshrl.u32 %v1139, 16
    %v1268 = vshrl.u32 %v1140, 16
    %v1269 = vshrl.u32 %v1141, 16
    %v1270 = vshrl.u32 %v1142, 16
    %v1271 = vshrl.u32 %v1143, 16
    %v1272 = vshrl.u32 %v1144, 16
    %v1273 = vshrl.u32 %v1145, 16
    %v1274 = vshrl.u32 %v1146, 16
    %v1275 = vshrl.u32 %v1147, 16
    %v1276 = vshrl.u32 %v1148, 16
    %v1277 = vshrl.u32 %v1149, 16
    %v1278 = vshrl.u32 %v1150, 16
    %v1279 = vshrl.u32 %v1151, 16
    %v1280 = vshrl.u32 %v1152, 16
    %v1281 = vshrl.u32 %v1153, 16
    %v1282 = vshrl.u32 %v1154, 16
    %v1283 = vshrl.u32 %v1155, 16
    %v1284 = vxor.u32 %v1028, %v1156
    %v1285 = vxor.u32 %v1029, %v1157
    %v1286 = vxor.u32 %v1030, %v1158
    %v1287 = vxor.u32 %v1031, %v1159
    %v1288 = vxor.u32 %v1032, %v1160
    %v1289 = vxor.u32 %v1033, %v1161
    %v1290 = vxor.u32 %v1034, %v1162
    %v1291 = vxor.u32 %v1035, %v1163
    %v1292 = vxor.u32 %v1036, %v1164
    %v1293 = vxor.u32 %v1037, %v1165
    %v1294 = vxor.u32 %v1038, %v1166
    %v1295 = vxor.u32 %v1039, %v1167
    %v1296 = vxor.u32 %v1040, %v1168
    %v1297 = vxor.u32 %v1041, %v1169
    %v1298 = vxor.u32 %v1042, %v1170
    %v1299 = vxor.u32 %v1043, %v1171
    %v1300 = vxor.u32 %v1044, %v1172
    %v1301 = vxor.u32 %v1045, %v1173
    %v1302 = vxor.u32 %v1046, %v1174
    %v1303 = vxor.u32 %v1047, %v1175
    %v1304 = vxor.u32 %v1048, %v1176
    %v1305 = vxor.u32 %v1049, %v1177
    %v1306 = vxor.u32 %v1050, %v1178
    %v1307 = vxor.u32 %v1051, %v1179
    %v1308 = vxor.u32 %v1052, %v1180
    %v1309 = vxor.u32 %v1053, %v1181
    %v1310 = vxor.u32 %v1054, %v1182
    %v1311 = vxor.u32 %v1055, %v1183
    %v1312 = vxor.u32 %v1056, %v1184
    %v1313 = vxor.u32 %v1057, %v1185
    %v1314 = vxor.u32 %v1058, %v1186
    %v1315 = vxor.u32 %v1059, %v1187
    %v1316 = vxor.u32 %v1060, %v1188
    %v1317 = vxor.u32 %v1061, %v1189
    %v1318 = vxor.u32 %v1062, %v1190
    %v1319 = vxor.u32 %v1063, %v1191
    %v1320 = vxor.u32 %v1064, %v1192
    %v1321 = vxor.u32 %v1065, %v1193
    %v1322 = vxor.u32 %v1066, %v1194
    %v1323 = vxor.u32 %v1067, %v1195
    %v1324 = vxor.u32 %v1068, %v1196
    %v1325 = vxor.u32 %v1069, %v1197
    %v1326 = vxor.u32 %v1070, %v1198
    %v1327 = vxor.u32 %v1071, %v1199
    %v1328 = vxor.u32 %v1072, %v1200
    %v1329 = vxor.u32 %v1073, %v1201
    %v1330 = vxor.u32 %v1074, %v1202
    %v1331 = vxor.u32 %v1075, %v1203
    %v1332 = vxor.u32 %v1076, %v1204
    %v1333 = vxor.u32 %v1077, %v1205
    %v1334 = vxor.u32 %v1078, %v1206
    %v1335 = vxor.u32 %v1079, %v1207
    %v1336 = vxor.u32 %v1080, %v1208
    %v1337 = vxor.u32 %v1081, %v1209
    %v1338 = vxor.u32 %v1082, %v1210
    %v1339 = vxor.u32 %v1083, %v1211
    %v1340 = vxor.u32 %v1084, %v1212
    %v1341 = vxor.u32 %v1085, %v1213
    %v1342 = vxor.u32 %v1086, %v1214
    %v1343 = vxor.u32 %v1087, %v1215
    %v1344 = vxor.u32 %v1088, %v1216
    %v1345 = vxor.u32 %v1089, %v1217
    %v1346 = vxor.u32 %v1090, %v1218
    %v1347 = vxor.u32 %v1091, %v1219
    %v1348 = vxor.u32 %v1092, %v1220
    %v1349 = vxor.u32 %v1093, %v1221
    %v1350 = vxor.u32 %v1094, %v1222
    %v1351 = vxor.u32 %v1095, %v1223
    %v1352 = vxor.u32 %v1096, %v1224
    %v1353 = vxor.u32 %v1097, %v1225
    %v1354 = vxor.u32 %v1098, %v1226
    %v1355 = vxor.u32 %v1099, %v1227
    %v1356 = vxor.u32 %v1100, %v1228
    %v1357 = vxor.u32 %v1101, %v1229
    %v1358 = vxor.u32 %v1102, %v1230
    %v1359 = vxor.u32 %v1103, %v1231
    %v1360 = vxor.u32 %v1104, %v1232
    %v1361 = vxor.u32 %v1105, %v1233
    %v1362 = vxor.u32 %v1106, %v1234
    %v1363 = vxor.u32 %v1107, %v1235
    %v1364 = vxor.u32 %v1108, %v1236
    %v1365 = vxor.u32 %v1109, %v1237
    %v1366 = vxor.u32 %v1110, %v1238
    %v1367 = vxor.u32 %v1111, %v1239
    %v1368 = vxor.u32 %v1112, %v1240
    %v1369 = vxor.u32 %v1113, %v1241
    %v1370 = vxor.u32 %v1114, %v1242
    %v1371 = vxor.u32 %v1115, %v1243
    %v1372 = vxor.u32 %v1116, %v1244
    %v1373 = vxor.u32 %v1117, %v1245
    %v1374 = vxor.u32 %v1118, %v1246
    %v1375 = vxor.u32 %v1119, %v1247
    %v1376 = vxor.u32 %v1120, %v1248
    %v1377 = vxor.u32 %v1121, %v1249
    %v1378 = vxor.u32 %v1122, %v1250
    %v1379 = vxor.u32 %v1123, %v1251
    %v1380 = vxor.u32 %v1124, %v1252
    %v1381 = vxor.u32 %v1125, %v1253
    %v1382 = vxor.u32 %v1126, %v1254
    %v1383 = vxor.u32 %v1127, %v1255
    %v1384 = vxor.u32 %v1128, %v1256
    %v1385 = vxor.u32 %v1129, %v1257
    %v1386 = vxor.u32 %v1130, %v1258
    %v1387 = vxor.u32 %v1131, %v1259
    %v1388 = vxor.u32 %v1132, %v1260
    %v1389 = vxor.u32 %v1133, %v1261
    %v1390 = vxor.u32 %v1134, %v1262
    %v1391 = vxor.u32 %v1135, %v1263
    %v1392 = vxor.u32 %v1136, %v1264
    %v1393 = vxor.u32 %v1137, %v1265
    %v1394 = vxor.u32 %v1138, %v1266
    %v1395 = vxor.u32 %v1139, %v1267
    %v1396 = vxor.u32 %v1140, %v1268
    %v1397 = vxor.u32 %v1141, %v1269
    %v1398 = vxor.u32 %v1142, %v1270
    %v1399 = vxor.u32 %v1143, %v1271
    %v1400 = vxor.u32 %v1144, %v1272
    %v1401 = vxor.u32 %v1145, %v1273
    %v1402 = vxor.u32 %v1146, %v1274
    %v1403 = vxor.u32 %v1147, %v1275
    %v1404 = vxor.u32 %v1148, %v1276
    %v1405 = vxor.u32 %v1149, %v1277
    %v1406 = vxor.u32 %v1150, %v1278
    %v1407 = vxor.u32 %v1151, %v1279
    %v1408 = vxor.u32 %v1152, %v1280
    %v1409 = vxor.u32 %v1153, %v1281
    %v1410 = vxor.u32 %v1154, %v1282
    %v1411 = vxor.u32 %v1155, %v1283
    %vm1412 = vcmp.lt.u32.totalorder %v1284, 2147483648
    %vm1413 = vcmp.lt.u32.totalorder %v1285, 2147483648
    %vm1414 = vcmp.lt.u32.totalorder %v1286, 2147483648
    %vm1415 = vcmp.lt.u32.totalorder %v1287, 2147483648
    %vm1416 = vcmp.lt.u32.totalorder %v1288, 2147483648
    %vm1417 = vcmp.lt.u32.totalorder %v1289, 2147483648
    %vm1418 = vcmp.lt.u32.totalorder %v1290, 2147483648
    %vm1419 = vcmp.lt.u32.totalorder %v1291, 2147483648
    %vm1420 = vcmp.lt.u32.totalorder %v1292, 2147483648
    %vm1421 = vcmp.lt.u32.totalorder %v1293, 2147483648
    %vm1422 = vcmp.lt.u32.totalorder %v1294, 2147483648
    %vm1423 = vcmp.lt.u32.totalorder %v1295, 2147483648
    %vm1424 = vcmp.lt.u32.totalorder %v1296, 2147483648
    %vm1425 = vcmp.lt.u32.totalorder %v1297, 2147483648
    %vm1426 = vcmp.lt.u32.totalorder %v1298, 2147483648
    %vm1427 = vcmp.lt.u32.totalorder %v1299, 2147483648
    %vm1428 = vcmp.lt.u32.totalorder %v1300, 2147483648
    %vm1429 = vcmp.lt.u32.totalorder %v1301, 2147483648
    %vm1430 = vcmp.lt.u32.totalorder %v1302, 2147483648
    %vm1431 = vcmp.lt.u32.totalorder %v1303, 2147483648
    %vm1432 = vcmp.lt.u32.totalorder %v1304, 2147483648
    %vm1433 = vcmp.lt.u32.totalorder %v1305, 2147483648
    %vm1434 = vcmp.lt.u32.totalorder %v1306, 2147483648
    %vm1435 = vcmp.lt.u32.totalorder %v1307, 2147483648
    %vm1436 = vcmp.lt.u32.totalorder %v1308, 2147483648
    %vm1437 = vcmp.lt.u32.totalorder %v1309, 2147483648
    %vm1438 = vcmp.lt.u32.totalorder %v1310, 2147483648
    %vm1439 = vcmp.lt.u32.totalorder %v1311, 2147483648
    %vm1440 = vcmp.lt.u32.totalorder %v1312, 2147483648
    %vm1441 = vcmp.lt.u32.totalorder %v1313, 2147483648
    %vm1442 = vcmp.lt.u32.totalorder %v1314, 2147483648
    %vm1443 = vcmp.lt.u32.totalorder %v1315, 2147483648
    %vm1444 = vcmp.lt.u32.totalorder %v1316, 2147483648
    %vm1445 = vcmp.lt.u32.totalorder %v1317, 2147483648
    %vm1446 = vcmp.lt.u32.totalorder %v1318, 2147483648
    %vm1447 = vcmp.lt.u32.totalorder %v1319, 2147483648
    %vm1448 = vcmp.lt.u32.totalorder %v1320, 2147483648
    %vm1449 = vcmp.lt.u32.totalorder %v1321, 2147483648
    %vm1450 = vcmp.lt.u32.totalorder %v1322, 2147483648
    %vm1451 = vcmp.lt.u32.totalorder %v1323, 2147483648
    %vm1452 = vcmp.lt.u32.totalorder %v1324, 2147483648
    %vm1453 = vcmp.lt.u32.totalorder %v1325, 2147483648
    %vm1454 = vcmp.lt.u32.totalorder %v1326, 2147483648
    %vm1455 = vcmp.lt.u32.totalorder %v1327, 2147483648
    %vm1456 = vcmp.lt.u32.totalorder %v1328, 2147483648
    %vm1457 = vcmp.lt.u32.totalorder %v1329, 2147483648
    %vm1458 = vcmp.lt.u32.totalorder %v1330, 2147483648
    %vm1459 = vcmp.lt.u32.totalorder %v1331, 2147483648
    %vm1460 = vcmp.lt.u32.totalorder %v1332, 2147483648
    %vm1461 = vcmp.lt.u32.totalorder %v1333, 2147483648
    %vm1462 = vcmp.lt.u32.totalorder %v1334, 2147483648
    %vm1463 = vcmp.lt.u32.totalorder %v1335, 2147483648
    %vm1464 = vcmp.lt.u32.totalorder %v1336, 2147483648
    %vm1465 = vcmp.lt.u32.totalorder %v1337, 2147483648
    %vm1466 = vcmp.lt.u32.totalorder %v1338, 2147483648
    %vm1467 = vcmp.lt.u32.totalorder %v1339, 2147483648
    %vm1468 = vcmp.lt.u32.totalorder %v1340, 2147483648
    %vm1469 = vcmp.lt.u32.totalorder %v1341, 2147483648
    %vm1470 = vcmp.lt.u32.totalorder %v1342, 2147483648
    %vm1471 = vcmp.lt.u32.totalorder %v1343, 2147483648
    %vm1472 = vcmp.lt.u32.totalorder %v1344, 2147483648
    %vm1473 = vcmp.lt.u32.totalorder %v1345, 2147483648
    %vm1474 = vcmp.lt.u32.totalorder %v1346, 2147483648
    %vm1475 = vcmp.lt.u32.totalorder %v1347, 2147483648
    %vm1476 = vcmp.lt.u32.totalorder %v1348, 2147483648
    %vm1477 = vcmp.lt.u32.totalorder %v1349, 2147483648
    %vm1478 = vcmp.lt.u32.totalorder %v1350, 2147483648
    %vm1479 = vcmp.lt.u32.totalorder %v1351, 2147483648
    %vm1480 = vcmp.lt.u32.totalorder %v1352, 2147483648
    %vm1481 = vcmp.lt.u32.totalorder %v1353, 2147483648
    %vm1482 = vcmp.lt.u32.totalorder %v1354, 2147483648
    %vm1483 = vcmp.lt.u32.totalorder %v1355, 2147483648
    %vm1484 = vcmp.lt.u32.totalorder %v1356, 2147483648
    %vm1485 = vcmp.lt.u32.totalorder %v1357, 2147483648
    %vm1486 = vcmp.lt.u32.totalorder %v1358, 2147483648
    %vm1487 = vcmp.lt.u32.totalorder %v1359, 2147483648
    %vm1488 = vcmp.lt.u32.totalorder %v1360, 2147483648
    %vm1489 = vcmp.lt.u32.totalorder %v1361, 2147483648
    %vm1490 = vcmp.lt.u32.totalorder %v1362, 2147483648
    %vm1491 = vcmp.lt.u32.totalorder %v1363, 2147483648
    %vm1492 = vcmp.lt.u32.totalorder %v1364, 2147483648
    %vm1493 = vcmp.lt.u32.totalorder %v1365, 2147483648
    %vm1494 = vcmp.lt.u32.totalorder %v1366, 2147483648
    %vm1495 = vcmp.lt.u32.totalorder %v1367, 2147483648
    %vm1496 = vcmp.lt.u32.totalorder %v1368, 2147483648
    %vm1497 = vcmp.lt.u32.totalorder %v1369, 2147483648
    %vm1498 = vcmp.lt.u32.totalorder %v1370, 2147483648
    %vm1499 = vcmp.lt.u32.totalorder %v1371, 2147483648
    %vm1500 = vcmp.lt.u32.totalorder %v1372, 2147483648
    %vm1501 = vcmp.lt.u32.totalorder %v1373, 2147483648
    %vm1502 = vcmp.lt.u32.totalorder %v1374, 2147483648
    %vm1503 = vcmp.lt.u32.totalorder %v1375, 2147483648
    %vm1504 = vcmp.lt.u32.totalorder %v1376, 2147483648
    %vm1505 = vcmp.lt.u32.totalorder %v1377, 2147483648
    %vm1506 = vcmp.lt.u32.totalorder %v1378, 2147483648
    %vm1507 = vcmp.lt.u32.totalorder %v1379, 2147483648
    %vm1508 = vcmp.lt.u32.totalorder %v1380, 2147483648
    %vm1509 = vcmp.lt.u32.totalorder %v1381, 2147483648
    %vm1510 = vcmp.lt.u32.totalorder %v1382, 2147483648
    %vm1511 = vcmp.lt.u32.totalorder %v1383, 2147483648
    %vm1512 = vcmp.lt.u32.totalorder %v1384, 2147483648
    %vm1513 = vcmp.lt.u32.totalorder %v1385, 2147483648
    %vm1514 = vcmp.lt.u32.totalorder %v1386, 2147483648
    %vm1515 = vcmp.lt.u32.totalorder %v1387, 2147483648
    %vm1516 = vcmp.lt.u32.totalorder %v1388, 2147483648
    %vm1517 = vcmp.lt.u32.totalorder %v1389, 2147483648
    %vm1518 = vcmp.lt.u32.totalorder %v1390, 2147483648
    %vm1519 = vcmp.lt.u32.totalorder %v1391, 2147483648
    %vm1520 = vcmp.lt.u32.totalorder %v1392, 2147483648
    %vm1521 = vcmp.lt.u32.totalorder %v1393, 2147483648
    %vm1522 = vcmp.lt.u32.totalorder %v1394, 2147483648
    %vm1523 = vcmp.lt.u32.totalorder %v1395, 2147483648
    %vm1524 = vcmp.lt.u32.totalorder %v1396, 2147483648
    %vm1525 = vcmp.lt.u32.totalorder %v1397, 2147483648
    %vm1526 = vcmp.lt.u32.totalorder %v1398, 2147483648
    %vm1527 = vcmp.lt.u32.totalorder %v1399, 2147483648
    %vm1528 = vcmp.lt.u32.totalorder %v1400, 2147483648
    %vm1529 = vcmp.lt.u32.totalorder %v1401, 2147483648
    %vm1530 = vcmp.lt.u32.totalorder %v1402, 2147483648
    %vm1531 = vcmp.lt.u32.totalorder %v1403, 2147483648
    %vm1532 = vcmp.lt.u32.totalorder %v1404, 2147483648
    %vm1533 = vcmp.lt.u32.totalorder %v1405, 2147483648
    %vm1534 = vcmp.lt.u32.totalorder %v1406, 2147483648
    %vm1535 = vcmp.lt.u32.totalorder %v1407, 2147483648
    %vm1536 = vcmp.lt.u32.totalorder %v1408, 2147483648
    %vm1537 = vcmp.lt.u32.totalorder %v1409, 2147483648
    %vm1538 = vcmp.lt.u32.totalorder %v1410, 2147483648
    %vm1539 = vcmp.lt.u32.totalorder %v1411, 2147483648
    %v1540 = vld [vmem:[#allocation4] sm:$0xff]
    %v1541 = vld [vmem:[#allocation4 + $0x8] sm:$0xff]
    %v1542 = vld [vmem:[#allocation4 + $0x10] sm:$0xff]
    %v1543 = vld [vmem:[#allocation4 + $0x18] sm:$0xff]
    %v1544 = vld [vmem:[#allocation4 + $0x20] sm:$0xff]
    %v1545 = vld [vmem:[#allocation4 + $0x28] sm:$0xff]
    %v1546 = vld [vmem:[#allocation4 + $0x30] sm:$0xff]
    %v1547 = vld [vmem:[#allocation4 + $0x38] sm:$0xff]
    %v1548 = vld [vmem:[#allocation4 + $0x40] sm:$0xff]
    %v1549 = vld [vmem:[#allocation4 + $0x48] sm:$0xff]
    %v1550 = vld [vmem:[#allocation4 + $0x50] sm:$0xff]
    %v1551 = vld [vmem:[#allocation4 + $0x58] sm:$0xff]
    %v1552 = vld [vmem:[#allocation4 + $0x60] sm:$0xff]
    %v1553 = vld [vmem:[#allocation4 + $0x68] sm:$0xff]
    %v1554 = vld [vmem:[#allocation4 + $0x70] sm:$0xff]
    %v1555 = vld [vmem:[#allocation4 + $0x78] sm:$0xff]
    %v1556 = vld [vmem:[#allocation4 + $0x80] sm:$0xff]
    %v1557 = vld [vmem:[#allocation4 + $0x88] sm:$0xff]
    %v1558 = vld [vmem:[#allocation4 + $0x90] sm:$0xff]
    %v1559 = vld [vmem:[#allocation4 + $0x98] sm:$0xff]
    %v1560 = vld [vmem:[#allocation4 + $0xa0] sm:$0xff]
    %v1561 = vld [vmem:[#allocation4 + $0xa8] sm:$0xff]
    %v1562 = vld [vmem:[#allocation4 + $0xb0] sm:$0xff]
    %v1563 = vld [vmem:[#allocation4 + $0xb8] sm:$0xff]
    %v1564 = vld [vmem:[#allocation4 + $0xc0] sm:$0xff]
    %v1565 = vld [vmem:[#allocation4 + $0xc8] sm:$0xff]
    %v1566 = vld [vmem:[#allocation4 + $0xd0] sm:$0xff]
    %v1567 = vld [vmem:[#allocation4 + $0xd8] sm:$0xff]
    %v1568 = vld [vmem:[#allocation4 + $0xe0] sm:$0xff]
    %v1569 = vld [vmem:[#allocation4 + $0xe8] sm:$0xff]
    %v1570 = vld [vmem:[#allocation4 + $0xf0] sm:$0xff]
    %v1571 = vld [vmem:[#allocation4 + $0xf8] sm:$0xff]
    %v1572 = vld [vmem:[#allocation4 + $0x100] sm:$0xff]
    %v1573 = vld [vmem:[#allocation4 + $0x108] sm:$0xff]
    %v1574 = vld [vmem:[#allocation4 + $0x110] sm:$0xff]
    %v1575 = vld [vmem:[#allocation4 + $0x118] sm:$0xff]
    %v1576 = vld [vmem:[#allocation4 + $0x120] sm:$0xff]
    %v1577 = vld [vmem:[#allocation4 + $0x128] sm:$0xff]
    %v1578 = vld [vmem:[#allocation4 + $0x130] sm:$0xff]
    %v1579 = vld [vmem:[#allocation4 + $0x138] sm:$0xff]
    %v1580 = vld [vmem:[#allocation4 + $0x140] sm:$0xff]
    %v1581 = vld [vmem:[#allocation4 + $0x148] sm:$0xff]
    %v1582 = vld [vmem:[#allocation4 + $0x150] sm:$0xff]
    %v1583 = vld [vmem:[#allocation4 + $0x158] sm:$0xff]
    %v1584 = vld [vmem:[#allocation4 + $0x160] sm:$0xff]
    %v1585 = vld [vmem:[#allocation4 + $0x168] sm:$0xff]
    %v1586 = vld [vmem:[#allocation4 + $0x170] sm:$0xff]
    %v1587 = vld [vmem:[#allocation4 + $0x178] sm:$0xff]
    %v1588 = vld [vmem:[#allocation4 + $0x180] sm:$0xff]
    %v1589 = vld [vmem:[#allocation4 + $0x188] sm:$0xff]
    %v1590 = vld [vmem:[#allocation4 + $0x190] sm:$0xff]
    %v1591 = vld [vmem:[#allocation4 + $0x198] sm:$0xff]
    %v1592 = vld [vmem:[#allocation4 + $0x1a0] sm:$0xff]
    %v1593 = vld [vmem:[#allocation4 + $0x1a8] sm:$0xff]
    %v1594 = vld [vmem:[#allocation4 + $0x1b0] sm:$0xff]
    %v1595 = vld [vmem:[#allocation4 + $0x1b8] sm:$0xff]
    %v1596 = vld [vmem:[#allocation4 + $0x1c0] sm:$0xff]
    %v1597 = vld [vmem:[#allocation4 + $0x1c8] sm:$0xff]
    %v1598 = vld [vmem:[#allocation4 + $0x1d0] sm:$0xff]
    %v1599 = vld [vmem:[#allocation4 + $0x1d8] sm:$0xff]
    %v1600 = vld [vmem:[#allocation4 + $0x1e0] sm:$0xff]
    %v1601 = vld [vmem:[#allocation4 + $0x1e8] sm:$0xff]
    %v1602 = vld [vmem:[#allocation4 + $0x1f0] sm:$0xff]
    %v1603 = vld [vmem:[#allocation4 + $0x1f8] sm:$0xff]
    %v1604 = vld [vmem:[#allocation4 + $0x200] sm:$0xff]
    %v1605 = vld [vmem:[#allocation4 + $0x208] sm:$0xff]
    %v1606 = vld [vmem:[#allocation4 + $0x210] sm:$0xff]
    %v1607 = vld [vmem:[#allocation4 + $0x218] sm:$0xff]
    %v1608 = vld [vmem:[#allocation4 + $0x220] sm:$0xff]
    %v1609 = vld [vmem:[#allocation4 + $0x228] sm:$0xff]
    %v1610 = vld [vmem:[#allocation4 + $0x230] sm:$0xff]
    %v1611 = vld [vmem:[#allocation4 + $0x238] sm:$0xff]
    %v1612 = vld [vmem:[#allocation4 + $0x240] sm:$0xff]
    %v1613 = vld [vmem:[#allocation4 + $0x248] sm:$0xff]
    %v1614 = vld [vmem:[#allocation4 + $0x250] sm:$0xff]
    %v1615 = vld [vmem:[#allocation4 + $0x258] sm:$0xff]
    %v1616 = vld [vmem:[#allocation4 + $0x260] sm:$0xff]
    %v1617 = vld [vmem:[#allocation4 + $0x268] sm:$0xff]
    %v1618 = vld [vmem:[#allocation4 + $0x270] sm:$0xff]
    %v1619 = vld [vmem:[#allocation4 + $0x278] sm:$0xff]
    %v1620 = vld [vmem:[#allocation4 + $0x280] sm:$0xff]
    %v1621 = vld [vmem:[#allocation4 + $0x288] sm:$0xff]
    %v1622 = vld [vmem:[#allocation4 + $0x290] sm:$0xff]
    %v1623 = vld [vmem:[#allocation4 + $0x298] sm:$0xff]
    %v1624 = vld [vmem:[#allocation4 + $0x2a0] sm:$0xff]
    %v1625 = vld [vmem:[#allocation4 + $0x2a8] sm:$0xff]
    %v1626 = vld [vmem:[#allocation4 + $0x2b0] sm:$0xff]
    %v1627 = vld [vmem:[#allocation4 + $0x2b8] sm:$0xff]
    %v1628 = vld [vmem:[#allocation4 + $0x2c0] sm:$0xff]
    %v1629 = vld [vmem:[#allocation4 + $0x2c8] sm:$0xff]
    %v1630 = vld [vmem:[#allocation4 + $0x2d0] sm:$0xff]
    %v1631 = vld [vmem:[#allocation4 + $0x2d8] sm:$0xff]
    %v1632 = vld [vmem:[#allocation4 + $0x2e0] sm:$0xff]
    %v1633 = vld [vmem:[#allocation4 + $0x2e8] sm:$0xff]
    %v1634 = vld [vmem:[#allocation4 + $0x2f0] sm:$0xff]
    %v1635 = vld [vmem:[#allocation4 + $0x2f8] sm:$0xff]
    %v1636 = vld [vmem:[#allocation4 + $0x300] sm:$0xff]
    %v1637 = vld [vmem:[#allocation4 + $0x308] sm:$0xff]
    %v1638 = vld [vmem:[#allocation4 + $0x310] sm:$0xff]
    %v1639 = vld [vmem:[#allocation4 + $0x318] sm:$0xff]
    %v1640 = vld [vmem:[#allocation4 + $0x320] sm:$0xff]
    %v1641 = vld [vmem:[#allocation4 + $0x328] sm:$0xff]
    %v1642 = vld [vmem:[#allocation4 + $0x330] sm:$0xff]
    %v1643 = vld [vmem:[#allocation4 + $0x338] sm:$0xff]
    %v1644 = vld [vmem:[#allocation4 + $0x340] sm:$0xff]
    %v1645 = vld [vmem:[#allocation4 + $0x348] sm:$0xff]
    %v1646 = vld [vmem:[#allocation4 + $0x350] sm:$0xff]
    %v1647 = vld [vmem:[#allocation4 + $0x358] sm:$0xff]
    %v1648 = vld [vmem:[#allocation4 + $0x360] sm:$0xff]
    %v1649 = vld [vmem:[#allocation4 + $0x368] sm:$0xff]
    %v1650 = vld [vmem:[#allocation4 + $0x370] sm:$0xff]
    %v1651 = vld [vmem:[#allocation4 + $0x378] sm:$0xff]
    %v1652 = vld [vmem:[#allocation4 + $0x380] sm:$0xff]
    %v1653 = vld [vmem:[#allocation4 + $0x388] sm:$0xff]
    %v1654 = vld [vmem:[#allocation4 + $0x390] sm:$0xff]
    %v1655 = vld [vmem:[#allocation4 + $0x398] sm:$0xff]
    %v1656 = vld [vmem:[#allocation4 + $0x3a0] sm:$0xff]
    %v1657 = vld [vmem:[#allocation4 + $0x3a8] sm:$0xff]
    %v1658 = vld [vmem:[#allocation4 + $0x3b0] sm:$0xff]
    %v1659 = vld [vmem:[#allocation4 + $0x3b8] sm:$0xff]
    %v1660 = vld [vmem:[#allocation4 + $0x3c0] sm:$0xff]
    %v1661 = vld [vmem:[#allocation4 + $0x3c8] sm:$0xff]
    %v1662 = vld [vmem:[#allocation4 + $0x3d0] sm:$0xff]
    %v1663 = vld [vmem:[#allocation4 + $0x3d8] sm:$0xff]
    %v1664 = vld [vmem:[#allocation4 + $0x3e0] sm:$0xff]
    %v1665 = vld [vmem:[#allocation4 + $0x3e8] sm:$0xff]
    %v1666 = vld [vmem:[#allocation4 + $0x3f0] sm:$0xff]
    %v1667 = vld [vmem:[#allocation4 + $0x3f8] sm:$0xff]
    %v1668 = vmul.f32 %v1540, 2.0
    %v1669 = vmul.f32 %v1541, 2.0
    %v1670 = vmul.f32 %v1542, 2.0
    %v1671 = vmul.f32 %v1543, 2.0
    %v1672 = vmul.f32 %v1544, 2.0
    %v1673 = vmul.f32 %v1545, 2.0
    %v1674 = vmul.f32 %v1546, 2.0
    %v1675 = vmul.f32 %v1547, 2.0
    %v1676 = vmul.f32 %v1548, 2.0
    %v1677 = vmul.f32 %v1549, 2.0
    %v1678 = vmul.f32 %v1550, 2.0
    %v1679 = vmul.f32 %v1551, 2.0
    %v1680 = vmul.f32 %v1552, 2.0
    %v1681 = vmul.f32 %v1553, 2.0
    %v1682 = vmul.f32 %v1554, 2.0
    %v1683 = vmul.f32 %v1555, 2.0
    %v1684 = vmul.f32 %v1556, 2.0
    %v1685 = vmul.f32 %v1557, 2.0
    %v1686 = vmul.f32 %v1558, 2.0
    %v1687 = vmul.f32 %v1559, 2.0
    %v1688 = vmul.f32 %v1560, 2.0
    %v1689 = vmul.f32 %v1561, 2.0
    %v1690 = vmul.f32 %v1562, 2.0
    %v1691 = vmul.f32 %v1563, 2.0
    %v1692 = vmul.f32 %v1564, 2.0
    %v1693 = vmul.f32 %v1565, 2.0
    %v1694 = vmul.f32 %v1566, 2.0
    %v1695 = vmul.f32 %v1567, 2.0
    %v1696 = vmul.f32 %v1568, 2.0
    %v1697 = vmul.f32 %v1569, 2.0
    %v1698 = vmul.f32 %v1570, 2.0
    %v1699 = vmul.f32 %v1571, 2.0
    %v1700 = vmul.f32 %v1572, 2.0
    %v1701 = vmul.f32 %v1573, 2.0
    %v1702 = vmul.f32 %v1574, 2.0
    %v1703 = vmul.f32 %v1575, 2.0
    %v1704 = vmul.f32 %v1576, 2.0
    %v1705 = vmul.f32 %v1577, 2.0
    %v1706 = vmul.f32 %v1578, 2.0
    %v1707 = vmul.f32 %v1579, 2.0
    %v1708 = vmul.f32 %v1580, 2.0
    %v1709 = vmul.f32 %v1581, 2.0
    %v1710 = vmul.f32 %v1582, 2.0
    %v1711 = vmul.f32 %v1583, 2.0
    %v1712 = vmul.f32 %v1584, 2.0
    %v1713 = vmul.f32 %v1585, 2.0
    %v1714 = vmul.f32 %v1586, 2.0
    %v1715 = vmul.f32 %v1587, 2.0
    %v1716 = vmul.f32 %v1588, 2.0
    %v1717 = vmul.f32 %v1589, 2.0
    %v1718 = vmul.f32 %v1590, 2.0
    %v1719 = vmul.f32 %v1591, 2.0
    %v1720 = vmul.f32 %v1592, 2.0
    %v1721 = vmul.f32 %v1593, 2.0
    %v1722 = vmul.f32 %v1594, 2.0
    %v1723 = vmul.f32 %v1595, 2.0
    %v1724 = vmul.f32 %v1596, 2.0
    %v1725 = vmul.f32 %v1597, 2.0
    %v1726 = vmul.f32 %v1598, 2.0
    %v1727 = vmul.f32 %v1599, 2.0
    %v1728 = vmul.f32 %v1600, 2.0
    %v1729 = vmul.f32 %v1601, 2.0
    %v1730 = vmul.f32 %v1602, 2.0
    %v1731 = vmul.f32 %v1603, 2.0
    %v1732 = vmul.f32 %v1604, 2.0
    %v1733 = vmul.f32 %v1605, 2.0
    %v1734 = vmul.f32 %v1606, 2.0
    %v1735 = vmul.f32 %v1607, 2.0
    %v1736 = vmul.f32 %v1608, 2.0
    %v1737 = vmul.f32 %v1609, 2.0
    %v1738 = vmul.f32 %v1610, 2.0
    %v1739 = vmul.f32 %v1611, 2.0
    %v1740 = vmul.f32 %v1612, 2.0
    %v1741 = vmul.f32 %v1613, 2.0
    %v1742 = vmul.f32 %v1614, 2.0
    %v1743 = vmul.f32 %v1615, 2.0
    %v1744 = vmul.f32 %v1616, 2.0
    %v1745 = vmul.f32 %v1617, 2.0
    %v1746 = vmul.f32 %v1618, 2.0
    %v1747 = vmul.f32 %v1619, 2.0
    %v1748 = vmul.f32 %v1620, 2.0
    %v1749 = vmul.f32 %v1621, 2.0
    %v1750 = vmul.f32 %v1622, 2.0
    %v1751 = vmul.f32 %v1623, 2.0
    %v1752 = vmul.f32 %v1624, 2.0
    %v1753 = vmul.f32 %v1625, 2.0
    %v1754 = vmul.f32 %v1626, 2.0
    %v1755 = vmul.f32 %v1627, 2.0
    %v1756 = vmul.f32 %v1628, 2.0
    %v1757 = vmul.f32 %v1629, 2.0
    %v1758 = vmul.f32 %v1630, 2.0
    %v1759 = vmul.f32 %v1631, 2.0
    %v1760 = vmul.f32 %v1632, 2.0
    %v1761 = vmul.f32 %v1633, 2.0
    %v1762 = vmul.f32 %v1634, 2.0
    %v1763 = vmul.f32 %v1635, 2.0
    %v1764 = vmul.f32 %v1636, 2.0
    %v1765 = vmul.f32 %v1637, 2.0
    %v1766 = vmul.f32 %v1638, 2.0
    %v1767 = vmul.f32 %v1639, 2.0
    %v1768 = vmul.f32 %v1640, 2.0
    %v1769 = vmul.f32 %v1641, 2.0
    %v1770 = vmul.f32 %v1642, 2.0
    %v1771 = vmul.f32 %v1643, 2.0
    %v1772 = vmul.f32 %v1644, 2.0
    %v1773 = vmul.f32 %v1645, 2.0
    %v1774 = vmul.f32 %v1646, 2.0
    %v1775 = vmul.f32 %v1647, 2.0
    %v1776 = vmul.f32 %v1648, 2.0
    %v1777 = vmul.f32 %v1649, 2.0
    %v1778 = vmul.f32 %v1650, 2.0
    %v1779 = vmul.f32 %v1651, 2.0
    %v1780 = vmul.f32 %v1652, 2.0
    %v1781 = vmul.f32 %v1653, 2.0
    %v1782 = vmul.f32 %v1654, 2.0
    %v1783 = vmul.f32 %v1655, 2.0
    %v1784 = vmul.f32 %v1656, 2.0
    %v1785 = vmul.f32 %v1657, 2.0
    %v1786 = vmul.f32 %v1658, 2.0
    %v1787 = vmul.f32 %v1659, 2.0
    %v1788 = vmul.f32 %v1660, 2.0
    %v1789 = vmul.f32 %v1661, 2.0
    %v1790 = vmul.f32 %v1662, 2.0
    %v1791 = vmul.f32 %v1663, 2.0
    %v1792 = vmul.f32 %v1664, 2.0
    %v1793 = vmul.f32 %v1665, 2.0
    %v1794 = vmul.f32 %v1666, 2.0
    %v1795 = vmul.f32 %v1667, 2.0
    %v1796 = vsel %vm1412, %v1668, 0.0
    %v1797 = vsel %vm1413, %v1669, 0.0
    %v1798 = vsel %vm1414, %v1670, 0.0
    %v1799 = vsel %vm1415, %v1671, 0.0
    %v1800 = vsel %vm1416, %v1672, 0.0
    %v1801 = vsel %vm1417, %v1673, 0.0
    %v1802 = vsel %vm1418, %v1674, 0.0
    %v1803 = vsel %vm1419, %v1675, 0.0
    %v1804 = vsel %vm1420, %v1676, 0.0
    %v1805 = vsel %vm1421, %v1677, 0.0
    %v1806 = vsel %vm1422, %v1678, 0.0
    %v1807 = vsel %vm1423, %v1679, 0.0
    %v1808 = vsel %vm1424, %v1680, 0.0
    %v1809 = vsel %vm1425, %v1681, 0.0
    %v1810 = vsel %vm1426, %v1682, 0.0
    %v1811 = vsel %vm1427, %v1683, 0.0
    %v1812 = vsel %vm1428, %v1684, 0.0
    %v1813 = vsel %vm1429, %v1685, 0.0
    %v1814 = vsel %vm1430, %v1686, 0.0
    %v1815 = vsel %vm1431, %v1687, 0.0
    %v1816 = vsel %vm1432, %v1688, 0.0
    %v1817 = vsel %vm1433, %v1689, 0.0
    %v1818 = vsel %vm1434, %v1690, 0.0
    %v1819 = vsel %vm1435, %v1691, 0.0
    %v1820 = vsel %vm1436, %v1692, 0.0
    %v1821 = vsel %vm1437, %v1693, 0.0
    %v1822 = vsel %vm1438, %v1694, 0.0
    %v1823 = vsel %vm1439, %v1695, 0.0
    %v1824 = vsel %vm1440, %v1696, 0.0
    %v1825 = vsel %vm1441, %v1697, 0.0
    %v1826 = vsel %vm1442, %v1698, 0.0
    %v1827 = vsel %vm1443, %v1699, 0.0
    %v1828 = vsel %vm1444, %v1700, 0.0
    %v1829 = vsel %vm1445, %v1701, 0.0
    %v1830 = vsel %vm1446, %v1702, 0.0
    %v1831 = vsel %vm1447, %v1703, 0.0
    %v1832 = vsel %vm1448, %v1704, 0.0
    %v1833 = vsel %vm1449, %v1705, 0.0
    %v1834 = vsel %vm1450, %v1706, 0.0
    %v1835 = vsel %vm1451, %v1707, 0.0
    %v1836 = vsel %vm1452, %v1708, 0.0
    %v1837 = vsel %vm1453, %v1709, 0.0
    %v1838 = vsel %vm1454, %v1710, 0.0
    %v1839 = vsel %vm1455, %v1711, 0.0
    %v1840 = vsel %vm1456, %v1712, 0.0
    %v1841 = vsel %vm1457, %v1713, 0.0
    %v1842 = vsel %vm1458, %v1714, 0.0
    %v1843 = vsel %vm1459, %v1715, 0.0
    %v1844 = vsel %vm1460, %v1716, 0.0
    %v1845 = vsel %vm1461, %v1717, 0.0
    %v1846 = vsel %vm1462, %v1718, 0.0
    %v1847 = vsel %vm1463, %v1719, 0.0
    %v1848 = vsel %vm1464, %v1720, 0.0
    %v1849 = vsel %vm1465, %v1721, 0.0
    %v1850 = vsel %vm1466, %v1722, 0.0
    %v1851 = vsel %vm1467, %v1723, 0.0
    %v1852 = vsel %vm1468, %v1724, 0.0
    %v1853 = vsel %vm1469, %v1725, 0.0
    %v1854 = vsel %vm1470, %v1726, 0.0
    %v1855 = vsel %vm1471, %v1727, 0.0
    %v1856 = vsel %vm1472, %v1728, 0.0
    %v1857 = vsel %vm1473, %v1729, 0.0
    %v1858 = vsel %vm1474, %v1730, 0.0
    %v1859 = vsel %vm1475, %v1731, 0.0
    %v1860 = vsel %vm1476, %v1732, 0.0
    %v1861 = vsel %vm1477, %v1733, 0.0
    %v1862 = vsel %vm1478, %v1734, 0.0
    %v1863 = vsel %vm1479, %v1735, 0.0
    %v1864 = vsel %vm1480, %v1736, 0.0
    %v1865 = vsel %vm1481, %v1737, 0.0
    %v1866 = vsel %vm1482, %v1738, 0.0
    %v1867 = vsel %vm1483, %v1739, 0.0
    %v1868 = vsel %vm1484, %v1740, 0.0
    %v1869 = vsel %vm1485, %v1741, 0.0
    %v1870 = vsel %vm1486, %v1742, 0.0
    %v1871 = vsel %vm1487, %v1743, 0.0
    %v1872 = vsel %vm1488, %v1744, 0.0
    %v1873 = vsel %vm1489, %v1745, 0.0
    %v1874 = vsel %vm1490, %v1746, 0.0
    %v1875 = vsel %vm1491, %v1747, 0.0
    %v1876 = vsel %vm1492, %v1748, 0.0
    %v1877 = vsel %vm1493, %v1749, 0.0
    %v1878 = vsel %vm1494, %v1750, 0.0
    %v1879 = vsel %vm1495, %v1751, 0.0
    %v1880 = vsel %vm1496, %v1752, 0.0
    %v1881 = vsel %vm1497, %v1753, 0.0
    %v1882 = vsel %vm1498, %v1754, 0.0
    %v1883 = vsel %vm1499, %v1755, 0.0
    %v1884 = vsel %vm1500, %v1756, 0.0
    %v1885 = vsel %vm1501, %v1757, 0.0
    %v1886 = vsel %vm1502, %v1758, 0.0
    %v1887 = vsel %vm1503, %v1759, 0.0
    %v1888 = vsel %vm1504, %v1760, 0.0
    %v1889 = vsel %vm1505, %v1761, 0.0
    %v1890 = vsel %vm1506, %v1762, 0.0
    %v1891 = vsel %vm1507, %v1763, 0.0
    %v1892 = vsel %vm1508, %v1764, 0.0
    %v1893 = vsel %vm1509, %v1765, 0.0
    %v1894 = vsel %vm1510, %v1766, 0.0
    %v1895 = vsel %vm1511, %v1767, 0.0
    %v1896 = vsel %vm1512, %v1768, 0.0
    %v1897 = vsel %vm1513, %v1769, 0.0
    %v1898 = vsel %vm1514, %v1770, 0.0
    %v1899 = vsel %vm1515, %v1771, 0.0
    %v1900 = vsel %vm1516, %v1772, 0.0
    %v1901 = vsel %vm1517, %v1773, 0.0
    %v1902 = vsel %vm1518, %v1774, 0.0
    %v1903 = vsel %vm1519, %v1775, 0.0
    %v1904 = vsel %vm1520, %v1776, 0.0
    %v1905 = vsel %vm1521, %v1777, 0.0
    %v1906 = vsel %vm1522, %v1778, 0.0
    %v1907 = vsel %vm1523, %v1779, 0.0
    %v1908 = vsel %vm1524, %v1780, 0.0
    %v1909 = vsel %vm1525, %v1781, 0.0
    %v1910 = vsel %vm1526, %v1782, 0.0
    %v1911 = vsel %vm1527, %v1783, 0.0
    %v1912 = vsel %vm1528, %v1784, 0.0
    %v1913 = vsel %vm1529, %v1785, 0.0
    %v1914 = vsel %vm1530, %v1786, 0.0
    %v1915 = vsel %vm1531, %v1787, 0.0
    %v1916 = vsel %vm1532, %v1788, 0.0
    %v1917 = vsel %vm1533, %v1789, 0.0
    %v1918 = vsel %vm1534, %v1790, 0.0
    %v1919 = vsel %vm1535, %v1791, 0.0
    %v1920 = vsel %vm1536, %v1792, 0.0
    %v1921 = vsel %vm1537, %v1793, 0.0
    %v1922 = vsel %vm1538, %v1794, 0.0
    %v1923 = vsel %vm1539, %v1795, 0.0
    %1924 = vst [vmem:[#allocation7] sm:$0xff] %v1796
    %1925 = vst [vmem:[#allocation7 + $0x8] sm:$0xff] %v1797
    %1926 = vst [vmem:[#allocation7 + $0x10] sm:$0xff] %v1798
    %1927 = vst [vmem:[#allocation7 + $0x18] sm:$0xff] %v1799
    %1928 = vst [vmem:[#allocation7 + $0x20] sm:$0xff] %v1800
    %1929 = vst [vmem:[#allocation7 + $0x28] sm:$0xff] %v1801
    %1930 = vst [vmem:[#allocation7 + $0x30] sm:$0xff] %v1802
    %1931 = vst [vmem:[#allocation7 + $0x38] sm:$0xff] %v1803
    %1932 = vst [vmem:[#allocation7 + $0x40] sm:$0xff] %v1804
    %1933 = vst [vmem:[#allocation7 + $0x48] sm:$0xff] %v1805
    %1934 = vst [vmem:[#allocation7 + $0x50] sm:$0xff] %v1806
    %1935 = vst [vmem:[#allocation7 + $0x58] sm:$0xff] %v1807
    %1936 = vst [vmem:[#allocation7 + $0x60] sm:$0xff] %v1808
    %1937 = vst [vmem:[#allocation7 + $0x68] sm:$0xff] %v1809
    %1938 = vst [vmem:[#allocation7 + $0x70] sm:$0xff] %v1810
    %1939 = vst [vmem:[#allocation7 + $0x78] sm:$0xff] %v1811
    %1940 = vst [vmem:[#allocation7 + $0x80] sm:$0xff] %v1812
    %1941 = vst [vmem:[#allocation7 + $0x88] sm:$0xff] %v1813
    %1942 = vst [vmem:[#allocation7 + $0x90] sm:$0xff] %v1814
    %1943 = vst [vmem:[#allocation7 + $0x98] sm:$0xff] %v1815
    %1944 = vst [vmem:[#allocation7 + $0xa0] sm:$0xff] %v1816
    %1945 = vst [vmem:[#allocation7 + $0xa8] sm:$0xff] %v1817
    %1946 = vst [vmem:[#allocation7 + $0xb0] sm:$0xff] %v1818
    %1947 = vst [vmem:[#allocation7 + $0xb8] sm:$0xff] %v1819
    %1948 = vst [vmem:[#allocation7 + $0xc0] sm:$0xff] %v1820
    %1949 = vst [vmem:[#allocation7 + $0xc8] sm:$0xff] %v1821
    %1950 = vst [vmem:[#allocation7 + $0xd0] sm:$0xff] %v1822
    %1951 = vst [vmem:[#allocation7 + $0xd8] sm:$0xff] %v1823
    %1952 = vst [vmem:[#allocation7 + $0xe0] sm:$0xff] %v1824
    %1953 = vst [vmem:[#allocation7 + $0xe8] sm:$0xff] %v1825
    %1954 = vst [vmem:[#allocation7 + $0xf0] sm:$0xff] %v1826
    %1955 = vst [vmem:[#allocation7 + $0xf8] sm:$0xff] %v1827
    %1956 = vst [vmem:[#allocation7 + $0x100] sm:$0xff] %v1828
    %1957 = vst [vmem:[#allocation7 + $0x108] sm:$0xff] %v1829
    %1958 = vst [vmem:[#allocation7 + $0x110] sm:$0xff] %v1830
    %1959 = vst [vmem:[#allocation7 + $0x118] sm:$0xff] %v1831
    %1960 = vst [vmem:[#allocation7 + $0x120] sm:$0xff] %v1832
    %1961 = vst [vmem:[#allocation7 + $0x128] sm:$0xff] %v1833
    %1962 = vst [vmem:[#allocation7 + $0x130] sm:$0xff] %v1834
    %1963 = vst [vmem:[#allocation7 + $0x138] sm:$0xff] %v1835
    %1964 = vst [vmem:[#allocation7 + $0x140] sm:$0xff] %v1836
    %1965 = vst [vmem:[#allocation7 + $0x148] sm:$0xff] %v1837
    %1966 = vst [vmem:[#allocation7 + $0x150] sm:$0xff] %v1838
    %1967 = vst [vmem:[#allocation7 + $0x158] sm:$0xff] %v1839
    %1968 = vst [vmem:[#allocation7 + $0x160] sm:$0xff] %v1840
    %1969 = vst [vmem:[#allocation7 + $0x168] sm:$0xff] %v1841
    %1970 = vst [vmem:[#allocation7 + $0x170] sm:$0xff] %v1842
    %1971 = vst [vmem:[#allocation7 + $0x178] sm:$0xff] %v1843
    %1972 = vst [vmem:[#allocation7 + $0x180] sm:$0xff] %v1844
    %1973 = vst [vmem:[#allocation7 + $0x188] sm:$0xff] %v1845
    %1974 = vst [vmem:[#allocation7 + $0x190] sm:$0xff] %v1846
    %1975 = vst [vmem:[#allocation7 + $0x198] sm:$0xff] %v1847
    %1976 = vst [vmem:[#allocation7 + $0x1a0] sm:$0xff] %v1848
    %1977 = vst [vmem:[#allocation7 + $0x1a8] sm:$0xff] %v1849
    %1978 = vst [vmem:[#allocation7 + $0x1b0] sm:$0xff] %v1850
    %1979 = vst [vmem:[#allocation7 + $0x1b8] sm:$0xff] %v1851
    %1980 = vst [vmem:[#allocation7 + $0x1c0] sm:$0xff] %v1852
    %1981 = vst [vmem:[#allocation7 + $0x1c8] sm:$0xff] %v1853
    %1982 = vst [vmem:[#allocation7 + $0x1d0] sm:$0xff] %v1854
    %1983 = vst [vmem:[#allocation7 + $0x1d8] sm:$0xff] %v1855
    %1984 = vst [vmem:[#allocation7 + $0x1e0] sm:$0xff] %v1856
    %1985 = vst [vmem:[#allocation7 + $0x1e8] sm:$0xff] %v1857
    %1986 = vst [vmem:[#allocation7 + $0x1f0] sm:$0xff] %v1858
    %1987 = vst [vmem:[#allocation7 + $0x1f8] sm:$0xff] %v1859
    %1988 = vst [vmem:[#allocation7 + $0x200] sm:$0xff] %v1860
    %1989 = vst [vmem:[#allocation7 + $0x208] sm:$0xff] %v1861
    %1990 = vst [vmem:[#allocation7 + $0x210] sm:$0xff] %v1862
    %1991 = vst [vmem:[#allocation7 + $0x218] sm:$0xff] %v1863
    %1992 = vst [vmem:[#allocation7 + $0x220] sm:$0xff] %v1864
    %1993 = vst [vmem:[#allocation7 + $0x228] sm:$0xff] %v1865
    %1994 = vst [vmem:[#allocation7 + $0x230] sm:$0xff] %v1866
    %1995 = vst [vmem:[#allocation7 + $0x238] sm:$0xff] %v1867
    %1996 = vst [vmem:[#allocation7 + $0x240] sm:$0xff] %v1868
    %1997 = vst [vmem:[#allocation7 + $0x248] sm:$0xff] %v1869
    %1998 = vst [vmem:[#allocation7 + $0x250] sm:$0xff] %v1870
    %1999 = vst [vmem:[#allocation7 + $0x258] sm:$0xff] %v1871
    %2000 = vst [vmem:[#allocation7 + $0x260] sm:$0xff] %v1872
    %2001 = vst [vmem:[#allocation7 + $0x268] sm:$0xff] %v1873
    %2002 = vst [vmem:[#allocation7 + $0x270] sm:$0xff] %v1874
    %2003 = vst [vmem:[#allocation7 + $0x278] sm:$0xff] %v1875
    %2004 = vst [vmem:[#allocation7 + $0x280] sm:$0xff] %v1876
    %2005 = vst [vmem:[#allocation7 + $0x288] sm:$0xff] %v1877
    %2006 = vst [vmem:[#allocation7 + $0x290] sm:$0xff] %v1878
    %2007 = vst [vmem:[#allocation7 + $0x298] sm:$0xff] %v1879
    %2008 = vst [vmem:[#allocation7 + $0x2a0] sm:$0xff] %v1880
    %2009 = vst [vmem:[#allocation7 + $0x2a8] sm:$0xff] %v1881
    %2010 = vst [vmem:[#allocation7 + $0x2b0] sm:$0xff] %v1882
    %2011 = vst [vmem:[#allocation7 + $0x2b8] sm:$0xff] %v1883
    %2012 = vst [vmem:[#allocation7 + $0x2c0] sm:$0xff] %v1884
    %2013 = vst [vmem:[#allocation7 + $0x2c8] sm:$0xff] %v1885
    %2014 = vst [vmem:[#allocation7 + $0x2d0] sm:$0xff] %v1886
    %2015 = vst [vmem:[#allocation7 + $0x2d8] sm:$0xff] %v1887
    %2016 = vst [vmem:[#allocation7 + $0x2e0] sm:$0xff] %v1888
    %2017 = vst [vmem:[#allocation7 + $0x2e8] sm:$0xff] %v1889
    %2018 = vst [vmem:[#allocation7 + $0x2f0] sm:$0xff] %v1890
    %2019 = vst [vmem:[#allocation7 + $0x2f8] sm:$0xff] %v1891
    %2020 = vst [vmem:[#allocation7 + $0x300] sm:$0xff] %v1892
    %2021 = vst [vmem:[#allocation7 + $0x308] sm:$0xff] %v1893
    %2022 = vst [vmem:[#allocation7 + $0x310] sm:$0xff] %v1894
    %2023 = vst [vmem:[#allocation7 + $0x318] sm:$0xff] %v1895
    %2024 = vst [vmem:[#allocation7 + $0x320] sm:$0xff] %v1896
    %2025 = vst [vmem:[#allocation7 + $0x328] sm:$0xff] %v1897
    %2026 = vst [vmem:[#allocation7 + $0x330] sm:$0xff] %v1898
    %2027 = vst [vmem:[#allocation7 + $0x338] sm:$0xff] %v1899
    %2028 = vst [vmem:[#allocation7 + $0x340] sm:$0xff] %v1900
    %2029 = vst [vmem:[#allocation7 + $0x348] sm:$0xff] %v1901
    %2030 = vst [vmem:[#allocation7 + $0x350] sm:$0xff] %v1902
    %2031 = vst [vmem:[#allocation7 + $0x358] sm:$0xff] %v1903
    %2032 = vst [vmem:[#allocation7 + $0x360] sm:$0xff] %v1904
    %2033 = vst [vmem:[#allocation7 + $0x368] sm:$0xff] %v1905
    %2034 = vst [vmem:[#allocation7 + $0x370] sm:$0xff] %v1906
    %2035 = vst [vmem:[#allocation7 + $0x378] sm:$0xff] %v1907
    %2036 = vst [vmem:[#allocation7 + $0x380] sm:$0xff] %v1908
    %2037 = vst [vmem:[#allocation7 + $0x388] sm:$0xff] %v1909
    %2038 = vst [vmem:[#allocation7 + $0x390] sm:$0xff] %v1910
    %2039 = vst [vmem:[#allocation7 + $0x398] sm:$0xff] %v1911
    %2040 = vst [vmem:[#allocation7 + $0x3a0] sm:$0xff] %v1912
    %2041 = vst [vmem:[#allocation7 + $0x3a8] sm:$0xff] %v1913
    %2042 = vst [vmem:[#allocation7 + $0x3b0] sm:$0xff] %v1914
    %2043 = vst [vmem:[#allocation7 + $0x3b8] sm:$0xff] %v1915
    %2044 = vst [vmem:[#allocation7 + $0x3c0] sm:$0xff] %v1916
    %2045 = vst [vmem:[#allocation7 + $0x3c8] sm:$0xff] %v1917
    %2046 = vst [vmem:[#allocation7 + $0x3d0] sm:$0xff] %v1918
    %2047 = vst [vmem:[#allocation7 + $0x3d8] sm:$0xff] %v1919
    %2048 = vst [vmem:[#allocation7 + $0x3e0] sm:$0xff] %v1920
    %2049 = vst [vmem:[#allocation7 + $0x3e8] sm:$0xff] %v1921
    %2050 = vst [vmem:[#allocation7 + $0x3f0] sm:$0xff] %v1922
    %2051 = vst [vmem:[#allocation7 + $0x3f8] sm:$0xff] %v1923
    // Predicated region
    $region10: #{tpu_custom_call.1} parent=1 // pred_check
      _
    $region11: #{tpu_custom_call.1} parent=1 // pred_check_branch
      %2053 = sbr.rel (0) target = $region13
    $region12: #{tpu_custom_call.1} parent=1 // pred_region
      %s2055 = ssub.s32 16384, 16384
      %2056 = vsyncadd [#allocation6], %s2055
      %s2057 = sshll.u32 [#allocation7], 4
      %s2058 = int_to_ptr.vmem [resolvable:$true] %s2057
      %2063 = dma.vmem_to_hbm [thread:$0]  %s2058, 16384, %s2, [#allocation6], 512, 512, 32
    $region13: #{tpu_custom_call.1} parent=1 // pred_fallthru
      _
    // Predicated region
    $region14: #{tpu_custom_call.1} parent=1 // pred_check
      _
    $region15: #{tpu_custom_call.1} parent=1 // pred_check_branch
      %2065 = sbr.rel (0) target = $region17
    $region16: #{tpu_custom_call.1} parent=1 // pred_region
      %2066 = dma.done [#allocation6], 16384
    $region17: #{tpu_custom_call.1} parent=1 // pred_fallthru
      _
    %2067 = vsyncpa [#allocation5], 1
    %2068 = vsyncpa [#allocation6], 1

</llo_original>
